<compile_context>
chip_gen: v6e
topology: v6e:2x2x1
jax: 0.10.0
libtpu: 0.0.40
codegen_flags: <defaults>
</compile_context>

<pallas_src>
import functools

import jax
import jax.numpy as jnp
from jax import lax
from jax.experimental import pallas as pl
from jax.experimental.pallas import tpu as pltpu

# Small, module-consistent hyperparameters (module uses vocab=50257, n_embed=384,
# block_size=128, n_head=6, n_layer=6 -- scaled down here, same structure).
VOCAB_SIZE = 512
N_EMBED    = 128
BLOCK_SIZE = 16
N_HEAD     = 4
N_LAYER    = 2
HEAD_SIZE  = N_EMBED // N_HEAD
LN_EPS     = 1e-5
NEG_INF    = -1e30
VOCAB_TILE = 256                  # lane-dense lm_head N tile (multiple of 256 for v6e/v7x MXU)
M_TILE     = 8                    # row tile for the lm_head grid ("parallel" axis)
VMEM_LIMIT = 32 * 1024 * 1024     # raise for the real config (n_embed=384, vocab=50257)


def _layernorm(h, w, b):
    mu = jnp.mean(h, axis=-1, keepdims=True)
    var = jnp.mean(jnp.square(h - mu), axis=-1, keepdims=True)
    return (h - mu) * lax.rsqrt(var + LN_EPS) * w + b


# ----------------------------- transformer blocks -----------------------------

def blocks_kernel(x_ref,
                  ln1w_ref, ln1b_ref, wqkv_ref, wproj_ref, bproj_ref,
                  ln2w_ref, ln2b_ref, w1_ref, b1_ref, w2_ref, b2_ref,
                  lnfw_ref, lnfb_ref,
                  hf_ref, x_acc):
    l = pl.program_id(1)

    @pl.when(l == 0)
    def _():
        x_acc[...] = x_ref[...]

    x = x_acc[...]                                    # (T, C) f32, VMEM-resident across layers
    T, C = x.shape
    scale = float(N_EMBED) ** -0.5                    # module scales by C**-0.5 with C = n_embed

    rows = lax.broadcasted_iota(jnp.int32, (T, T), 0)
    cols = lax.broadcasted_iota(jnp.int32, (T, T), 1)
    causal = cols <= rows                             # plain per-batch causal mask (no div/mod)

    # ---- x = x + MultiHeadAttention(LayerNorm1(x)) ----
    h = _layernorm(x, ln1w_ref[0], ln1b_ref[0])
    qkv = jnp.dot(h.astype(jnp.bfloat16), wqkv_ref[0],
                  preferred_element_type=jnp.float32)            # (T, 3C)
    sa = jnp.zeros((T, C), jnp.float32)
    # TODO(synk): on v5e, batching the heads into one leading-batch-dim einsum would
    # further improve MXU occupancy; the static per-head loop is kept for robust lowering.
    for hd in range(N_HEAD):
        o = hd * HEAD_SIZE
        q = qkv[:, o:o + HEAD_SIZE].astype(jnp.bfloat16)
        k = qkv[:, C + o:C + o + HEAD_SIZE].astype(jnp.bfloat16)
        v = qkv[:, 2 * C + o:2 * C + o + HEAD_SIZE].astype(jnp.bfloat16)
        # q @ k^T without materializing the transpose (contract last dims).
        wei = lax.dot_general(q, k, (((1,), (1,)), ((), ())),
                              preferred_element_type=jnp.float32) * scale
        wei = jnp.where(causal, wei, NEG_INF)
        wei = wei - jnp.max(wei, axis=-1, keepdims=True)
        p = jnp.exp(wei)
        p = p * pl.reciprocal(jnp.sum(p, axis=-1, keepdims=True), approx=True)
        # TODO(synk): attention dropout omitted (identity in eval mode)
        head = jnp.dot(p.astype(jnp.bfloat16), v, preferred_element_type=jnp.float32)
        # fold projection in per head: lane-dense (T, C) accumulator, no scratch stores
        sa = sa + jnp.dot(head.astype(jnp.bfloat16),
                          wproj_ref[0, o:o + HEAD_SIZE, :],
                          preferred_element_type=jnp.float32)
    x = x + sa + bproj_ref[0]                                    # residual

    # ---- x = x + FeedForward(LayerNorm2(x)) ----
    h2 = _layernorm(x, ln2w_ref[0], ln2b_ref[0])
    ff = jnp.dot(h2.astype(jnp.bfloat16), w1_ref[0],
                 preferred_element_type=jnp.float32) + b1_ref[0]
    ff = jnp.maximum(ff, 0.0)
    ff = jnp.dot(ff.astype(jnp.bfloat16), w2_ref[0],
                 preferred_element_type=jnp.float32) + b2_ref[0]
    x = x + ff

    x_acc[...] = x

    @pl.when(l == pl.num_programs(1) - 1)
    def _():
        hf_ref[...] = _layernorm(x, lnfw_ref[...], lnfb_ref[...]).astype(hf_ref.dtype)


def run_blocks(params, x_flat, batch, seqlen):
    M, C = x_flat.shape
    T = seqlen
    H4 = 4 * N_EMBED
    return pl.pallas_call(
        blocks_kernel,
        out_shape=jax.ShapeDtypeStruct((M, C), jnp.bfloat16),
        grid_spec=pltpu.PrefetchScalarGridSpec(
            num_scalar_prefetch=0,
            grid=(batch, N_LAYER),
            in_specs=[
                pl.BlockSpec((T, C), lambda b, l: (b, 0)),            # x (per-batch rows)
                pl.BlockSpec((1, 1, C), lambda b, l: (l, 0, 0)),      # ln1_w
                pl.BlockSpec((1, 1, C), lambda b, l: (l, 0, 0)),      # ln1_b
                pl.BlockSpec((1, C, 3 * C), lambda b, l: (l, 0, 0)),  # wqkv
                pl.BlockSpec((1, C, C), lambda b, l: (l, 0, 0)),      # wproj
                pl.BlockSpec((1, 1, C), lambda b, l: (l, 0, 0)),      # bproj
                pl.BlockSpec((1, 1, C), lambda b, l: (l, 0, 0)),      # ln2_w
                pl.BlockSpec((1, 1, C), lambda b, l: (l, 0, 0)),      # ln2_b
                pl.BlockSpec((1, C, H4), lambda b, l: (l, 0, 0)),     # w1
                pl.BlockSpec((1, 1, H4), lambda b, l: (l, 0, 0)),     # b1
                pl.BlockSpec((1, H4, C), lambda b, l: (l, 0, 0)),     # w2
                pl.BlockSpec((1, 1, C), lambda b, l: (l, 0, 0)),      # b2
                pl.BlockSpec((1, C), lambda b, l: (0, 0)),            # lnf_w
                pl.BlockSpec((1, C), lambda b, l: (0, 0)),            # lnf_b
            ],
            out_specs=pl.BlockSpec((T, C), lambda b, l: (b, 0)),      # final-LN hidden (bf16)
            scratch_shapes=[pltpu.VMEM((T, C), jnp.float32)],          # persistent activation
        ),
        compiler_params=pltpu.CompilerParams(
            dimension_semantics=("parallel", "arbitrary"),
            vmem_limit_bytes=VMEM_LIMIT),
    )(x_flat,
      params["ln1_w"], params["ln1_b"], params["wqkv"], params["wproj"], params["bproj"],
      params["ln2_w"], params["ln2_b"], params["w1"], params["b1"], params["w2"], params["b2"],
      params["lnf_w"], params["lnf_b"])


# ------------------------ lm_head (vocab-tiled) + fused CE stats ------------------------

def lm_head_kernel(tgt_ref, hf_ref, w_ref, b_ref,
                   logits_ref, m_ref, l_ref, picked_ref,
                   m_acc, l_acc, p_acc):
    j = pl.program_id(1)

    @pl.when(j == 0)
    def _():
        m_acc[...] = jnp.full_like(m_acc, NEG_INF)
        l_acc[...] = jnp.zeros_like(l_acc)
        p_acc[...] = jnp.zeros_like(p_acc)

    logits = jnp.dot(hf_ref[...], w_ref[...],
                     preferred_element_type=jnp.float32) + b_ref[...]   # (MT, VT) f32
    logits_ref[...] = logits                                            # lane-dense tile store

    # fused cross-entropy statistics: online logsumexp + picked-target logit
    m_new = jnp.maximum(m_acc[...], jnp.max(logits, axis=-1, keepdims=True))
    alpha = jnp.exp(m_acc[...] - m_new)
    l_acc[...] = alpha * l_acc[...] + jnp.sum(jnp.exp(logits - m_new), axis=-1, keepdims=True)
    m_acc[...] = m_new

    col = j * VOCAB_TILE + lax.broadcasted_iota(jnp.int32, logits.shape, 1)
    p_acc[...] += jnp.sum(jnp.where(col == tgt_ref[...], logits, 0.0),
                          axis=-1, keepdims=True)

    @pl.when(j == pl.num_programs(1) - 1)
    def _():
        m_ref[...] = m_acc[...]
        l_ref[...] = l_acc[...]
        picked_ref[...] = p_acc[...]


def run_lm_head(params, hf, targets_flat):
    M, C = hf.shape
    V = VOCAB_SIZE
    MT, VT = M_TILE, VOCAB_TILE
    tg = targets_flat.reshape(M, 1).astype(jnp.int32)
    return pl.pallas_call(
        lm_head_kernel,
        out_shape=(jax.ShapeDtypeStruct((M, V), jnp.float32),   # logits
                   jax.ShapeDtypeStruct((M, 1), jnp.float32),   # per-row max
                   jax.ShapeDtypeStruct((M, 1), jnp.float32),   # per-row sum-exp
                   jax.ShapeDtypeStruct((M, 1), jnp.float32)),  # per-row picked logit
        grid_spec=pltpu.PrefetchScalarGridSpec(
            num_scalar_prefetch=0,
            grid=(M // MT, V // VT),
            in_specs=[
                pl.BlockSpec((MT, 1), lambda i, j: (i, 0)),     # targets
                pl.BlockSpec((MT, C), lambda i, j: (i, 0)),     # hf
                pl.BlockSpec((C, VT), lambda i, j: (0, j)),     # lm_w streamed over vocab
                pl.BlockSpec((1, VT), lambda i, j: (0, j)),     # lm_b
            ],
            out_specs=(
                pl.BlockSpec((MT, VT), lambda i, j: (i, j)),    # lane-dense logits tiles
                pl.BlockSpec((MT, 1), lambda i, j: (i, 0)),
                pl.BlockSpec((MT, 1), lambda i, j: (i, 0)),
                pl.BlockSpec((MT, 1), lambda i, j: (i, 0)),
            ),
            scratch_shapes=[pltpu.VMEM((MT, 1), jnp.float32)] * 3,
        ),
        compiler_params=pltpu.CompilerParams(
            dimension_semantics=("parallel", "arbitrary"),
            vmem_limit_bytes=VMEM_LIMIT),
    )(tg, hf, params["lm_w"], params["lm_b"])


# ----------------------------------- params / forward -----------------------------------

def init_params(key):
    ks = jax.random.split(key, 3 + N_LAYER)

    def dense(k, shape, dtype=jnp.bfloat16, scale=0.02):
        return (scale * jax.random.normal(k, shape, dtype=jnp.float32)).astype(dtype)

    C, H4, V, L = N_EMBED, 4 * N_EMBED, VOCAB_SIZE, N_LAYER

    wqkv, wproj, w1, w2 = [], [], [], []
    for l in range(L):
        bk = jax.random.split(ks[3 + l], 4)
        wqkv.append(dense(bk[0], (C, 3 * C)))        # fused [q | k | v]
        wproj.append(dense(bk[1], (C, C)))
        w1.append(dense(bk[2], (C, H4)))
        w2.append(dense(bk[3], (H4, C)))

    return {
        # embeddings stay f32; gathers happen in plain JAX
        "tok_emb": dense(ks[0], (V, C), dtype=jnp.float32),
        "pos_emb": dense(ks[1], (BLOCK_SIZE, C), dtype=jnp.float32),
        "lm_w": dense(ks[2], (C, V)),                # bf16, [in, out]
        "lm_b": jnp.zeros((1, V), jnp.float32),
        "lnf_w": jnp.ones((1, C), jnp.float32),
        "lnf_b": jnp.zeros((1, C), jnp.float32),
        # per-layer weights stacked on a leading layer axis (streamed via BlockSpecs)
        "wqkv": jnp.stack(wqkv),                     # (L, C, 3C) bf16
        "wproj": jnp.stack(wproj),                   # (L, C, C)  bf16
        "bproj": jnp.zeros((L, 1, C), jnp.float32),
        "w1": jnp.stack(w1),                         # (L, C, 4C) bf16
        "b1": jnp.zeros((L, 1, H4), jnp.float32),
        "w2": jnp.stack(w2),                         # (L, 4C, C) bf16
        "b2": jnp.zeros((L, 1, C), jnp.float32),
        "ln1_w": jnp.ones((L, 1, C), jnp.float32),
        "ln1_b": jnp.zeros((L, 1, C), jnp.float32),
        "ln2_w": jnp.ones((L, 1, C), jnp.float32),
        "ln2_b": jnp.zeros((L, 1, C), jnp.float32),
    }


def forward(params, idx, targets=None):
    B, T = idx.shape
    # TODO(synk): embedding gather kept in plain JAX (PrefetchScalarGridSpec row-gather
    # fusion left out at this toy size).
    tok = jnp.take(params["tok_emb"], idx, axis=0)         # (B, T, C)
    pos = params["pos_emb"][:T][None, :, :]                # (1, T, C)
    x = (tok + pos).reshape(B * T, N_EMBED)                # (B*T, C) f32
    hf = run_blocks(params, x, B, T)                       # (B*T, C) bf16, post final LN
    tg = (targets.reshape(B * T) if targets is not None
          else jnp.zeros((B * T,), jnp.int32))
    logits_flat, m, l, picked = run_lm_head(params, hf, tg)
    logits = logits_flat.reshape(B, T, VOCAB_SIZE)
    loss = None
    if targets is not None:
        # F.cross_entropy (mean reduction) from fused per-row stats: logsumexp - picked
        loss = jnp.mean(m[:, 0] + jnp.log(l[:, 0]) - picked[:, 0])
    return logits, loss


if __name__ == "__main__":
    key = jax.random.PRNGKey(0)
    pkey, ikey, tkey = jax.random.split(key, 3)
    params = init_params(pkey)

    B, T = 2, 8
    idx = jax.random.randint(ikey, (B, T), 0, VOCAB_SIZE, dtype=jnp.int32)
    targets = jax.random.randint(tkey, (B, T), 0, VOCAB_SIZE, dtype=jnp.int32)

    logits, loss = forward(params, idx, targets)
    logits = jax.block_until_ready(logits)
    loss = jax.block_until_ready(loss)

    assert logits.shape == (B, T, VOCAB_SIZE)
    assert bool(jnp.isfinite(logits).all()) and bool(jnp.isfinite(loss))
    print("KERNEL_OK")
</pallas_src>

<mosaic_0001>
module attributes {stable_mosaic.version = 11 : i64} {
  func.func @blocks_kernel(%arg0: i32, %arg1: i32, %arg2: memref<8x128xf32, #tpu.memory_space<vmem>>, %arg3: memref<1x1x128xf32, #tpu.memory_space<vmem>>, %arg4: memref<1x1x128xf32, #tpu.memory_space<vmem>>, %arg5: memref<1x128x384xbf16, #tpu.memory_space<vmem>>, %arg6: memref<1x128x128xbf16, #tpu.memory_space<vmem>>, %arg7: memref<1x1x128xf32, #tpu.memory_space<vmem>>, %arg8: memref<1x1x128xf32, #tpu.memory_space<vmem>>, %arg9: memref<1x1x128xf32, #tpu.memory_space<vmem>>, %arg10: memref<1x128x512xbf16, #tpu.memory_space<vmem>>, %arg11: memref<1x1x512xf32, #tpu.memory_space<vmem>>, %arg12: memref<1x512x128xbf16, #tpu.memory_space<vmem>>, %arg13: memref<1x1x128xf32, #tpu.memory_space<vmem>>, %arg14: memref<1x128xf32, #tpu.memory_space<vmem>>, %arg15: memref<1x128xf32, #tpu.memory_space<vmem>>, %arg16: memref<8x128xbf16, #tpu.memory_space<vmem>>, %arg17: memref<8x128xf32, #tpu.memory_space<vmem>>) attributes {dimension_semantics = [#tpu.dimension_semantics<parallel>, #tpu.dimension_semantics<arbitrary>], iteration_bounds = array<i64: 2, 2>, scalar_prefetch = 0 : i64, scratch_operands = 1 : i64, tpu.core_type = #tpu.core_type<tc>, window_params = [{transform_indices = @transform_0, window_bounds = array<i64: 8, 128>}, {transform_indices = @transform_1, window_bounds = array<i64: 1, 1, 128>}, {transform_indices = @transform_2, window_bounds = array<i64: 1, 1, 128>}, {transform_indices = @transform_3, window_bounds = array<i64: 1, 128, 384>}, {transform_indices = @transform_4, window_bounds = array<i64: 1, 128, 128>}, {transform_indices = @transform_5, window_bounds = array<i64: 1, 1, 128>}, {transform_indices = @transform_6, window_bounds = array<i64: 1, 1, 128>}, {transform_indices = @transform_7, window_bounds = array<i64: 1, 1, 128>}, {transform_indices = @transform_8, window_bounds = array<i64: 1, 128, 512>}, {transform_indices = @transform_9, window_bounds = array<i64: 1, 1, 512>}, {transform_indices = @transform_10, window_bounds = array<i64: 1, 512, 128>}, {transform_indices = @transform_11, window_bounds = array<i64: 1, 1, 128>}, {pipeline_mode = #tpu.pipeline_mode<synchronous>, transform_indices = @transform_12, window_bounds = array<i64: 1, 128>}, {pipeline_mode = #tpu.pipeline_mode<synchronous>, transform_indices = @transform_13, window_bounds = array<i64: 1, 128>}, {transform_indices = @transform_14, window_bounds = array<i64: 8, 128>}]} {
    %c0_i32 = arith.constant 0 : i32
    %0 = arith.cmpi eq, %arg1, %c0_i32 : i32
    %1 = arith.extui %0 : i1 to i32
    %c0_i32_0 = arith.constant 0 : i32
    %2 = arith.cmpi ne, %1, %c0_i32_0 : i32
    scf.if %2 {
      %c0_86 = arith.constant 0 : index
      %c0_87 = arith.constant 0 : index
      %204 = vector.load %arg2[%c0_86, %c0_87] : memref<8x128xf32, #tpu.memory_space<vmem>>, vector<8x128xf32>
      %c0_88 = arith.constant 0 : index
      %c0_89 = arith.constant 0 : index
      %205 = vector.load %arg17[%c0_88, %c0_89] : memref<8x128xf32, #tpu.memory_space<vmem>>, vector<8x128xf32>
      tpu.vector_store %arg17[%c0_88, %c0_89], %204 {strides = array<i32>} : memref<8x128xf32, #tpu.memory_space<vmem>>, vector<8x128xf32>,
    } else {
    }
    %c0 = arith.constant 0 : index
    %c0_1 = arith.constant 0 : index
    %3 = vector.load %arg17[%c0, %c0_1] : memref<8x128xf32, #tpu.memory_space<vmem>>, vector<8x128xf32>
    %4 = tpu.iota {dimensions = array<i32: 0>} : vector<8x8xi32>
    %5 = tpu.iota {dimensions = array<i32: 1>} : vector<8x8xi32>
    %6 = arith.cmpi sle, %5, %4 : vector<8x8xi32>
    %c0_2 = arith.constant 0 : index
    %c0_3 = arith.constant 0 : index
    %c0_4 = arith.constant 0 : index
    %7 = vector.load %arg3[%c0_2, %c0_3, %c0_4] : memref<1x1x128xf32, #tpu.memory_space<vmem>>, vector<1x1x128xf32>
    %8 = vector.shape_cast %7 : vector<1x1x128xf32> to vector<1x128xf32>
    %c0_5 = arith.constant 0 : index
    %c0_6 = arith.constant 0 : index
    %c0_7 = arith.constant 0 : index
    %9 = vector.load %arg4[%c0_5, %c0_6, %c0_7] : memref<1x1x128xf32, #tpu.memory_space<vmem>>, vector<1x1x128xf32>
    %10 = vector.shape_cast %9 : vector<1x1x128xf32> to vector<1x128xf32>
    %cst = arith.constant dense<0.000000e+00> : vector<8xf32>
    %11 = vector.multi_reduction <add>, %3, %cst [1] : vector<8x128xf32> to vector<8xf32>
    %12 = vector.shape_cast %11 : vector<8xf32> to vector<8x1xf32>
    %cst_8 = arith.constant 1.280000e+02 : f32
    %13 = vector.broadcast %cst_8 : f32 to vector<8x1xf32>
    %14 = arith.divf %12, %13 : vector<8x1xf32>
    %15 = vector.broadcast %14 : vector<8x1xf32> to vector<8x128xf32>
    %16 = arith.subf %3, %15 : vector<8x128xf32>
    %17 = arith.mulf %16, %16 : vector<8x128xf32>
    %cst_9 = arith.constant dense<0.000000e+00> : vector<8xf32>
    %18 = vector.multi_reduction <add>, %17, %cst_9 [1] : vector<8x128xf32> to vector<8xf32>
    %19 = vector.shape_cast %18 : vector<8xf32> to vector<8x1xf32>
    %cst_10 = arith.constant 1.280000e+02 : f32
    %20 = vector.broadcast %cst_10 : f32 to vector<8x1xf32>
    %21 = arith.divf %19, %20 : vector<8x1xf32>
    %22 = vector.broadcast %14 : vector<8x1xf32> to vector<8x128xf32>
    %23 = arith.subf %3, %22 : vector<8x128xf32>
    %cst_11 = arith.constant 9.99999974E-6 : f32
    %24 = vector.broadcast %cst_11 : f32 to vector<8x1xf32>
    %25 = arith.addf %21, %24 : vector<8x1xf32>
    %26 = math.rsqrt %25 : vector<8x1xf32>
    %27 = vector.broadcast %26 : vector<8x1xf32> to vector<8x128xf32>
    %28 = arith.mulf %23, %27 : vector<8x128xf32>
    %29 = vector.broadcast %8 : vector<1x128xf32> to vector<8x128xf32>
    %30 = arith.mulf %28, %29 : vector<8x128xf32>
    %31 = vector.broadcast %10 : vector<1x128xf32> to vector<8x128xf32>
    %32 = arith.addf %30, %31 : vector<8x128xf32>
    %33 = arith.truncf %32 : vector<8x128xf32> to vector<8x128xbf16>
    %c0_12 = arith.constant 0 : index
    %c0_13 = arith.constant 0 : index
    %c0_14 = arith.constant 0 : index
    %34 = vector.load %arg5[%c0_12, %c0_13, %c0_14] : memref<1x128x384xbf16, #tpu.memory_space<vmem>>, vector<1x128x384xbf16>
    %35 = vector.shape_cast %34 : vector<1x128x384xbf16> to vector<128x384xbf16>
    %cst_15 = arith.constant dense<0.000000e+00> : vector<8x384xf32>
    %36 = tpu.matmul %33, %35, %cst_15 {dimension_numbers = #tpu.dot_dimension_numbers<[1], [0], [0], [1], [0, 0, 1, 1], [], []>} : vector<8x128xbf16>, vector<128x384xbf16>, vector<8x384xf32> -> vector<8x384xf32>
    %cst_16 = arith.constant 0.000000e+00 : f32
    %37 = vector.broadcast %cst_16 : f32 to vector<8x128xf32>
    %38 = vector.extract_strided_slice %36 {offsets = [0, 0], sizes = [8, 32], strides = [1, 1]} : vector<8x384xf32> to vector<8x32xf32>
    %39 = arith.truncf %38 : vector<8x32xf32> to vector<8x32xbf16>
    %40 = vector.extract_strided_slice %36 {offsets = [0, 128], sizes = [8, 32], strides = [1, 1]} : vector<8x384xf32> to vector<8x32xf32>
    %41 = arith.truncf %40 : vector<8x32xf32> to vector<8x32xbf16>
    %42 = vector.extract_strided_slice %36 {offsets = [0, 256], sizes = [8, 32], strides = [1, 1]} : vector<8x384xf32> to vector<8x32xf32>
    %43 = arith.truncf %42 : vector<8x32xf32> to vector<8x32xbf16>
    %cst_17 = arith.constant dense<0.000000e+00> : vector<8x8xf32>
    %44 = tpu.matmul %39, %41, %cst_17 {dimension_numbers = #tpu.dot_dimension_numbers<[1], [1], [0], [0], [0, 0, 1, 0], [], []>} : vector<8x32xbf16>, vector<8x32xbf16>, vector<8x8xf32> -> vector<8x8xf32>
    %cst_18 = arith.constant 0.0883883461 : f32
    %45 = vector.broadcast %cst_18 : f32 to vector<8x8xf32>
    %46 = arith.mulf %44, %45 : vector<8x8xf32>
    %cst_19 = arith.constant -1.000000e+30 : f32
    %47 = vector.broadcast %cst_19 : f32 to vector<8x8xf32>
    %48 = arith.select %6, %46, %47 : vector<8x8xi1>, vector<8x8xf32>
    %cst_20 = arith.constant dense<0xFF800000> : vector<8xf32>
    %49 = vector.multi_reduction <maximumf>, %48, %cst_20 [1] : vector<8x8xf32> to vector<8xf32>
    %50 = vector.shape_cast %49 : vector<8xf32> to vector<8x1xf32>
    %51 = vector.broadcast %50 : vector<8x1xf32> to vector<8x8xf32>
    %52 = arith.subf %48, %51 : vector<8x8xf32>
    %53 = math.exp %52 : vector<8x8xf32>
    %cst_21 = arith.constant dense<0.000000e+00> : vector<8xf32>
    %54 = vector.multi_reduction <add>, %53, %cst_21 [1] : vector<8x8xf32> to vector<8xf32>
    %55 = vector.shape_cast %54 : vector<8xf32> to vector<8x1xf32>
    %56 = tpu.reciprocal %55 {approx = true} : vector<8x1xf32> -> vector<8x1xf32>
    %57 = vector.broadcast %56 : vector<8x1xf32> to vector<8x8xf32>
    %58 = arith.mulf %53, %57 : vector<8x8xf32>
    %59 = arith.truncf %58 : vector<8x8xf32> to vector<8x8xbf16>
    %cst_22 = arith.constant dense<0.000000e+00> : vector<8x32xf32>
    %60 = tpu.matmul %59, %43, %cst_22 {dimension_numbers = #tpu.dot_dimension_numbers<[1], [0], [0], [1], [0, 0, 1, 1], [], []>} : vector<8x8xbf16>, vector<8x32xbf16>, vector<8x32xf32> -> vector<8x32xf32>
    %61 = arith.truncf %60 : vector<8x32xf32> to vector<8x32xbf16>
    %c0_23 = arith.constant 0 : index
    %c0_24 = arith.constant 0 : index
    %c0_25 = arith.constant 0 : index
    %62 = vector.load %arg6[%c0_23, %c0_24, %c0_25] : memref<1x128x128xbf16, #tpu.memory_space<vmem>>, vector<1x32x128xbf16>
    %63 = vector.shape_cast %62 : vector<1x32x128xbf16> to vector<32x128xbf16>
    %cst_26 = arith.constant dense<0.000000e+00> : vector<8x128xf32>
    %64 = tpu.matmul %61, %63, %cst_26 {dimension_numbers = #tpu.dot_dimension_numbers<[1], [0], [0], [1], [0, 0, 1, 1], [], []>} : vector<8x32xbf16>, vector<32x128xbf16>, vector<8x128xf32> -> vector<8x128xf32>
    %65 = arith.addf %37, %64 : vector<8x128xf32>
    %66 = vector.extract_strided_slice %36 {offsets = [0, 32], sizes = [8, 32], strides = [1, 1]} : vector<8x384xf32> to vector<8x32xf32>
    %67 = arith.truncf %66 : vector<8x32xf32> to vector<8x32xbf16>
    %68 = vector.extract_strided_slice %36 {offsets = [0, 160], sizes = [8, 32], strides = [1, 1]} : vector<8x384xf32> to vector<8x32xf32>
    %69 = arith.truncf %68 : vector<8x32xf32> to vector<8x32xbf16>
    %70 = vector.extract_strided_slice %36 {offsets = [0, 288], sizes = [8, 32], strides = [1, 1]} : vector<8x384xf32> to vector<8x32xf32>
    %71 = arith.truncf %70 : vector<8x32xf32> to vector<8x32xbf16>
    %cst_27 = arith.constant dense<0.000000e+00> : vector<8x8xf32>
    %72 = tpu.matmul %67, %69, %cst_27 {dimension_numbers = #tpu.dot_dimension_numbers<[1], [1], [0], [0], [0, 0, 1, 0], [], []>} : vector<8x32xbf16>, vector<8x32xbf16>, vector<8x8xf32> -> vector<8x8xf32>
    %cst_28 = arith.constant 0.0883883461 : f32
    %73 = vector.broadcast %cst_28 : f32 to vector<8x8xf32>
    %74 = arith.mulf %72, %73 : vector<8x8xf32>
    %cst_29 = arith.constant -1.000000e+30 : f32
    %75 = vector.broadcast %cst_29 : f32 to vector<8x8xf32>
    %76 = arith.select %6, %74, %75 : vector<8x8xi1>, vector<8x8xf32>
    %cst_30 = arith.constant dense<0xFF800000> : vector<8xf32>
    %77 = vector.multi_reduction <maximumf>, %76, %cst_30 [1] : vector<8x8xf32> to vector<8xf32>
    %78 = vector.shape_cast %77 : vector<8xf32> to vector<8x1xf32>
    %79 = vector.broadcast %78 : vector<8x1xf32> to vector<8x8xf32>
    %80 = arith.subf %76, %79 : vector<8x8xf32>
    %81 = math.exp %80 : vector<8x8xf32>
    %cst_31 = arith.constant dense<0.000000e+00> : vector<8xf32>
    %82 = vector.multi_reduction <add>, %81, %cst_31 [1] : vector<8x8xf32> to vector<8xf32>
    %83 = vector.shape_cast %82 : vector<8xf32> to vector<8x1xf32>
    %84 = tpu.reciprocal %83 {approx = true} : vector<8x1xf32> -> vector<8x1xf32>
    %85 = vector.broadcast %84 : vector<8x1xf32> to vector<8x8xf32>
    %86 = arith.mulf %81, %85 : vector<8x8xf32>
    %87 = arith.truncf %86 : vector<8x8xf32> to vector<8x8xbf16>
    %cst_32 = arith.constant dense<0.000000e+00> : vector<8x32xf32>
    %88 = tpu.matmul %87, %71, %cst_32 {dimension_numbers = #tpu.dot_dimension_numbers<[1], [0], [0], [1], [0, 0, 1, 1], [], []>} : vector<8x8xbf16>, vector<8x32xbf16>, vector<8x32xf32> -> vector<8x32xf32>
    %89 = arith.truncf %88 : vector<8x32xf32> to vector<8x32xbf16>
    %c0_33 = arith.constant 0 : index
    %c32 = arith.constant 32 : index
    %c0_34 = arith.constant 0 : index
    %90 = vector.load %arg6[%c0_33, %c32, %c0_34] : memref<1x128x128xbf16, #tpu.memory_space<vmem>>, vector<1x32x128xbf16>
    %91 = vector.shape_cast %90 : vector<1x32x128xbf16> to vector<32x128xbf16>
    %cst_35 = arith.constant dense<0.000000e+00> : vector<8x128xf32>
    %92 = tpu.matmul %89, %91, %cst_35 {dimension_numbers = #tpu.dot_dimension_numbers<[1], [0], [0], [1], [0, 0, 1, 1], [], []>} : vector<8x32xbf16>, vector<32x128xbf16>, vector<8x128xf32> -> vector<8x128xf32>
    %93 = arith.addf %65, %92 : vector<8x128xf32>
    %94 = vector.extract_strided_slice %36 {offsets = [0, 64], sizes = [8, 32], strides = [1, 1]} : vector<8x384xf32> to vector<8x32xf32>
    %95 = arith.truncf %94 : vector<8x32xf32> to vector<8x32xbf16>
    %96 = vector.extract_strided_slice %36 {offsets = [0, 192], sizes = [8, 32], strides = [1, 1]} : vector<8x384xf32> to vector<8x32xf32>
    %97 = arith.truncf %96 : vector<8x32xf32> to vector<8x32xbf16>
    %98 = vector.extract_strided_slice %36 {offsets = [0, 320], sizes = [8, 32], strides = [1, 1]} : vector<8x384xf32> to vector<8x32xf32>
    %99 = arith.truncf %98 : vector<8x32xf32> to vector<8x32xbf16>
    %cst_36 = arith.constant dense<0.000000e+00> : vector<8x8xf32>
    %100 = tpu.matmul %95, %97, %cst_36 {dimension_numbers = #tpu.dot_dimension_numbers<[1], [1], [0], [0], [0, 0, 1, 0], [], []>} : vector<8x32xbf16>, vector<8x32xbf16>, vector<8x8xf32> -> vector<8x8xf32>
    %cst_37 = arith.constant 0.0883883461 : f32
    %101 = vector.broadcast %cst_37 : f32 to vector<8x8xf32>
    %102 = arith.mulf %100, %101 : vector<8x8xf32>
    %cst_38 = arith.constant -1.000000e+30 : f32
    %103 = vector.broadcast %cst_38 : f32 to vector<8x8xf32>
    %104 = arith.select %6, %102, %103 : vector<8x8xi1>, vector<8x8xf32>
    %cst_39 = arith.constant dense<0xFF800000> : vector<8xf32>
    %105 = vector.multi_reduction <maximumf>, %104, %cst_39 [1] : vector<8x8xf32> to vector<8xf32>
    %106 = vector.shape_cast %105 : vector<8xf32> to vector<8x1xf32>
    %107 = vector.broadcast %106 : vector<8x1xf32> to vector<8x8xf32>
    %108 = arith.subf %104, %107 : vector<8x8xf32>
    %109 = math.exp %108 : vector<8x8xf32>
    %cst_40 = arith.constant dense<0.000000e+00> : vector<8xf32>
    %110 = vector.multi_reduction <add>, %109, %cst_40 [1] : vector<8x8xf32> to vector<8xf32>
    %111 = vector.shape_cast %110 : vector<8xf32> to vector<8x1xf32>
    %112 = tpu.reciprocal %111 {approx = true} : vector<8x1xf32> -> vector<8x1xf32>
    %113 = vector.broadcast %112 : vector<8x1xf32> to vector<8x8xf32>
    %114 = arith.mulf %109, %113 : vector<8x8xf32>
    %115 = arith.truncf %114 : vector<8x8xf32> to vector<8x8xbf16>
    %cst_41 = arith.constant dense<0.000000e+00> : vector<8x32xf32>
    %116 = tpu.matmul %115, %99, %cst_41 {dimension_numbers = #tpu.dot_dimension_numbers<[1], [0], [0], [1], [0, 0, 1, 1], [], []>} : vector<8x8xbf16>, vector<8x32xbf16>, vector<8x32xf32> -> vector<8x32xf32>
    %117 = arith.truncf %116 : vector<8x32xf32> to vector<8x32xbf16>
    %c0_42 = arith.constant 0 : index
    %c64 = arith.constant 64 : index
    %c0_43 = arith.constant 0 : index
    %118 = vector.load %arg6[%c0_42, %c64, %c0_43] : memref<1x128x128xbf16, #tpu.memory_space<vmem>>, vector<1x32x128xbf16>
    %119 = vector.shape_cast %118 : vector<1x32x128xbf16> to vector<32x128xbf16>
    %cst_44 = arith.constant dense<0.000000e+00> : vector<8x128xf32>
    %120 = tpu.matmul %117, %119, %cst_44 {dimension_numbers = #tpu.dot_dimension_numbers<[1], [0], [0], [1], [0, 0, 1, 1], [], []>} : vector<8x32xbf16>, vector<32x128xbf16>, vector<8x128xf32> -> vector<8x128xf32>
    %121 = arith.addf %93, %120 : vector<8x128xf32>
    %122 = vector.extract_strided_slice %36 {offsets = [0, 96], sizes = [8, 32], strides = [1, 1]} : vector<8x384xf32> to vector<8x32xf32>
    %123 = arith.truncf %122 : vector<8x32xf32> to vector<8x32xbf16>
    %124 = vector.extract_strided_slice %36 {offsets = [0, 224], sizes = [8, 32], strides = [1, 1]} : vector<8x384xf32> to vector<8x32xf32>
    %125 = arith.truncf %124 : vector<8x32xf32> to vector<8x32xbf16>
    %126 = vector.extract_strided_slice %36 {offsets = [0, 352], sizes = [8, 32], strides = [1, 1]} : vector<8x384xf32> to vector<8x32xf32>
    %127 = arith.truncf %126 : vector<8x32xf32> to vector<8x32xbf16>
    %cst_45 = arith.constant dense<0.000000e+00> : vector<8x8xf32>
    %128 = tpu.matmul %123, %125, %cst_45 {dimension_numbers = #tpu.dot_dimension_numbers<[1], [1], [0], [0], [0, 0, 1, 0], [], []>} : vector<8x32xbf16>, vector<8x32xbf16>, vector<8x8xf32> -> vector<8x8xf32>
    %cst_46 = arith.constant 0.0883883461 : f32
    %129 = vector.broadcast %cst_46 : f32 to vector<8x8xf32>
    %130 = arith.mulf %128, %129 : vector<8x8xf32>
    %cst_47 = arith.constant -1.000000e+30 : f32
    %131 = vector.broadcast %cst_47 : f32 to vector<8x8xf32>
    %132 = arith.select %6, %130, %131 : vector<8x8xi1>, vector<8x8xf32>
    %cst_48 = arith.constant dense<0xFF800000> : vector<8xf32>
    %133 = vector.multi_reduction <maximumf>, %132, %cst_48 [1] : vector<8x8xf32> to vector<8xf32>
    %134 = vector.shape_cast %133 : vector<8xf32> to vector<8x1xf32>
    %135 = vector.broadcast %134 : vector<8x1xf32> to vector<8x8xf32>
    %136 = arith.subf %132, %135 : vector<8x8xf32>
    %137 = math.exp %136 : vector<8x8xf32>
    %cst_49 = arith.constant dense<0.000000e+00> : vector<8xf32>
    %138 = vector.multi_reduction <add>, %137, %cst_49 [1] : vector<8x8xf32> to vector<8xf32>
    %139 = vector.shape_cast %138 : vector<8xf32> to vector<8x1xf32>
    %140 = tpu.reciprocal %139 {approx = true} : vector<8x1xf32> -> vector<8x1xf32>
    %141 = vector.broadcast %140 : vector<8x1xf32> to vector<8x8xf32>
    %142 = arith.mulf %137, %141 : vector<8x8xf32>
    %143 = arith.truncf %142 : vector<8x8xf32> to vector<8x8xbf16>
    %cst_50 = arith.constant dense<0.000000e+00> : vector<8x32xf32>
    %144 = tpu.matmul %143, %127, %cst_50 {dimension_numbers = #tpu.dot_dimension_numbers<[1], [0], [0], [1], [0, 0, 1, 1], [], []>} : vector<8x8xbf16>, vector<8x32xbf16>, vector<8x32xf32> -> vector<8x32xf32>
    %145 = arith.truncf %144 : vector<8x32xf32> to vector<8x32xbf16>
    %c0_51 = arith.constant 0 : index
    %c96 = arith.constant 96 : index
    %c0_52 = arith.constant 0 : index
    %146 = vector.load %arg6[%c0_51, %c96, %c0_52] : memref<1x128x128xbf16, #tpu.memory_space<vmem>>, vector<1x32x128xbf16>
    %147 = vector.shape_cast %146 : vector<1x32x128xbf16> to vector<32x128xbf16>
    %cst_53 = arith.constant dense<0.000000e+00> : vector<8x128xf32>
    %148 = tpu.matmul %145, %147, %cst_53 {dimension_numbers = #tpu.dot_dimension_numbers<[1], [0], [0], [1], [0, 0, 1, 1], [], []>} : vector<8x32xbf16>, vector<32x128xbf16>, vector<8x128xf32> -> vector<8x128xf32>
    %149 = arith.addf %121, %148 : vector<8x128xf32>
    %150 = arith.addf %3, %149 : vector<8x128xf32>
    %c0_54 = arith.constant 0 : index
    %c0_55 = arith.constant 0 : index
    %c0_56 = arith.constant 0 : index
    %151 = vector.load %arg7[%c0_54, %c0_55, %c0_56] : memref<1x1x128xf32, #tpu.memory_space<vmem>>, vector<1x1x128xf32>
    %152 = vector.shape_cast %151 : vector<1x1x128xf32> to vector<1x128xf32>
    %153 = vector.broadcast %152 : vector<1x128xf32> to vector<8x128xf32>
    %154 = arith.addf %150, %153 : vector<8x128xf32>
    %c0_57 = arith.constant 0 : index
    %c0_58 = arith.constant 0 : index
    %c0_59 = arith.constant 0 : index
    %155 = vector.load %arg8[%c0_57, %c0_58, %c0_59] : memref<1x1x128xf32, #tpu.memory_space<vmem>>, vector<1x1x128xf32>
    %156 = vector.shape_cast %155 : vector<1x1x128xf32> to vector<1x128xf32>
    %c0_60 = arith.constant 0 : index
    %c0_61 = arith.constant 0 : index
    %c0_62 = arith.constant 0 : index
    %157 = vector.load %arg9[%c0_60, %c0_61, %c0_62] : memref<1x1x128xf32, #tpu.memory_space<vmem>>, vector<1x1x128xf32>
    %158 = vector.shape_cast %157 : vector<1x1x128xf32> to vector<1x128xf32>
    %cst_63 = arith.constant dense<0.000000e+00> : vector<8xf32>
    %159 = vector.multi_reduction <add>, %154, %cst_63 [1] : vector<8x128xf32> to vector<8xf32>
    %160 = vector.shape_cast %159 : vector<8xf32> to vector<8x1xf32>
    %cst_64 = arith.constant 1.280000e+02 : f32
    %161 = vector.broadcast %cst_64 : f32 to vector<8x1xf32>
    %162 = arith.divf %160, %161 : vector<8x1xf32>
    %163 = vector.broadcast %162 : vector<8x1xf32> to vector<8x128xf32>
    %164 = arith.subf %154, %163 : vector<8x128xf32>
    %165 = arith.mulf %164, %164 : vector<8x128xf32>
    %cst_65 = arith.constant dense<0.000000e+00> : vector<8xf32>
    %166 = vector.multi_reduction <add>, %165, %cst_65 [1] : vector<8x128xf32> to vector<8xf32>
    %167 = vector.shape_cast %166 : vector<8xf32> to vector<8x1xf32>
    %cst_66 = arith.constant 1.280000e+02 : f32
    %168 = vector.broadcast %cst_66 : f32 to vector<8x1xf32>
    %169 = arith.divf %167, %168 : vector<8x1xf32>
    %170 = vector.broadcast %162 : vector<8x1xf32> to vector<8x128xf32>
    %171 = arith.subf %154, %170 : vector<8x128xf32>
    %cst_67 = arith.constant 9.99999974E-6 : f32
    %172 = vector.broadcast %cst_67 : f32 to vector<8x1xf32>
    %173 = arith.addf %169, %172 : vector<8x1xf32>
    %174 = math.rsqrt %173 : vector<8x1xf32>
    %175 = vector.broadcast %174 : vector<8x1xf32> to vector<8x128xf32>
    %176 = arith.mulf %171, %175 : vector<8x128xf32>
    %177 = vector.broadcast %156 : vector<1x128xf32> to vector<8x128xf32>
    %178 = arith.mulf %176, %177 : vector<8x128xf32>
    %179 = vector.broadcast %158 : vector<1x128xf32> to vector<8x128xf32>
    %180 = arith.addf %178, %179 : vector<8x128xf32>
    %181 = arith.truncf %180 : vector<8x128xf32> to vector<8x128xbf16>
    %c0_68 = arith.constant 0 : index
    %c0_69 = arith.constant 0 : index
    %c0_70 = arith.constant 0 : index
    %182 = vector.load %arg10[%c0_68, %c0_69, %c0_70] : memref<1x128x512xbf16, #tpu.memory_space<vmem>>, vector<1x128x512xbf16>
    %183 = vector.shape_cast %182 : vector<1x128x512xbf16> to vector<128x512xbf16>
    %cst_71 = arith.constant dense<0.000000e+00> : vector<8x512xf32>
    %184 = tpu.matmul %181, %183, %cst_71 {dimension_numbers = #tpu.dot_dimension_numbers<[1], [0], [0], [1], [0, 0, 1, 1], [], []>} : vector<8x128xbf16>, vector<128x512xbf16>, vector<8x512xf32> -> vector<8x512xf32>
    %c0_72 = arith.constant 0 : index
    %c0_73 = arith.constant 0 : index
    %c0_74 = arith.constant 0 : index
    %185 = vector.load %arg11[%c0_72, %c0_73, %c0_74] : memref<1x1x512xf32, #tpu.memory_space<vmem>>, vector<1x1x512xf32>
    %186 = vector.shape_cast %185 : vector<1x1x512xf32> to vector<1x512xf32>
    %187 = vector.broadcast %186 : vector<1x512xf32> to vector<8x512xf32>
    %188 = arith.addf %184, %187 : vector<8x512xf32>
    %cst_75 = arith.constant 0.000000e+00 : f32
    %189 = vector.broadcast %cst_75 : f32 to vector<8x512xf32>
    %190 = arith.maximumf %188, %189 : vector<8x512xf32>
    %191 = arith.truncf %190 : vector<8x512xf32> to vector<8x512xbf16>
    %c0_76 = arith.constant 0 : index
    %c0_77 = arith.constant 0 : index
    %c0_78 = arith.constant 0 : index
    %192 = vector.load %arg12[%c0_76, %c0_77, %c0_78] : memref<1x512x128xbf16, #tpu.memory_space<vmem>>, vector<1x512x128xbf16>
    %193 = vector.shape_cast %192 : vector<1x512x128xbf16> to vector<512x128xbf16>
    %cst_79 = arith.constant dense<0.000000e+00> : vector<8x128xf32>
    %194 = tpu.matmul %191, %193, %cst_79 {dimension_numbers = #tpu.dot_dimension_numbers<[1], [0], [0], [1], [0, 0, 1, 1], [], []>} : vector<8x512xbf16>, vector<512x128xbf16>, vector<8x128xf32> -> vector<8x128xf32>
    %c0_80 = arith.constant 0 : index
    %c0_81 = arith.constant 0 : index
    %c0_82 = arith.constant 0 : index
    %195 = vector.load %arg13[%c0_80, %c0_81, %c0_82] : memref<1x1x128xf32, #tpu.memory_space<vmem>>, vector<1x1x128xf32>
    %196 = vector.shape_cast %195 : vector<1x1x128xf32> to vector<1x128xf32>
    %197 = vector.broadcast %196 : vector<1x128xf32> to vector<8x128xf32>
    %198 = arith.addf %194, %197 : vector<8x128xf32>
    %199 = arith.addf %154, %198 : vector<8x128xf32>
    %c0_83 = arith.constant 0 : index
    %c0_84 = arith.constant 0 : index
    %200 = vector.load %arg17[%c0_83, %c0_84] : memref<8x128xf32, #tpu.memory_space<vmem>>, vector<8x128xf32>
    tpu.vector_store %arg17[%c0_83, %c0_84], %199 {strides = array<i32>} : memref<8x128xf32, #tpu.memory_space<vmem>>, vector<8x128xf32>,
    %c1_i32 = arith.constant 1 : i32
    %201 = arith.cmpi eq, %arg1, %c1_i32 : i32
    %202 = arith.extui %201 : i1 to i32
    %c0_i32_85 = arith.constant 0 : i32
    %203 = arith.cmpi ne, %202, %c0_i32_85 : i32
    scf.if %203 {
      %c0_86 = arith.constant 0 : index
      %c0_87 = arith.constant 0 : index
      %204 = vector.load %arg14[%c0_86, %c0_87] : memref<1x128xf32, #tpu.memory_space<vmem>>, vector<1x128xf32>
      %c0_88 = arith.constant 0 : index
      %c0_89 = arith.constant 0 : index
      %205 = vector.load %arg15[%c0_88, %c0_89] : memref<1x128xf32, #tpu.memory_space<vmem>>, vector<1x128xf32>
      %cst_90 = arith.constant dense<0.000000e+00> : vector<8xf32>
      %206 = vector.multi_reduction <add>, %199, %cst_90 [1] : vector<8x128xf32> to vector<8xf32>
      %207 = vector.shape_cast %206 : vector<8xf32> to vector<8x1xf32>
      %cst_91 = arith.constant 1.280000e+02 : f32
      %208 = vector.broadcast %cst_91 : f32 to vector<8x1xf32>
      %209 = arith.divf %207, %208 : vector<8x1xf32>
      %210 = vector.broadcast %209 : vector<8x1xf32> to vector<8x128xf32>
      %211 = arith.subf %199, %210 : vector<8x128xf32>
      %212 = arith.mulf %211, %211 : vector<8x128xf32>
      %cst_92 = arith.constant dense<0.000000e+00> : vector<8xf32>
      %213 = vector.multi_reduction <add>, %212, %cst_92 [1] : vector<8x128xf32> to vector<8xf32>
      %214 = vector.shape_cast %213 : vector<8xf32> to vector<8x1xf32>
      %cst_93 = arith.constant 1.280000e+02 : f32
      %215 = vector.broadcast %cst_93 : f32 to vector<8x1xf32>
      %216 = arith.divf %214, %215 : vector<8x1xf32>
      %217 = vector.broadcast %209 : vector<8x1xf32> to vector<8x128xf32>
      %218 = arith.subf %199, %217 : vector<8x128xf32>
      %cst_94 = arith.constant 9.99999974E-6 : f32
      %219 = vector.broadcast %cst_94 : f32 to vector<8x1xf32>
      %220 = arith.addf %216, %219 : vector<8x1xf32>
      %221 = math.rsqrt %220 : vector<8x1xf32>
      %222 = vector.broadcast %221 : vector<8x1xf32> to vector<8x128xf32>
      %223 = arith.mulf %218, %222 : vector<8x128xf32>
      %224 = vector.broadcast %204 : vector<1x128xf32> to vector<8x128xf32>
      %225 = arith.mulf %223, %224 : vector<8x128xf32>
      %226 = vector.broadcast %205 : vector<1x128xf32> to vector<8x128xf32>
      %227 = arith.addf %225, %226 : vector<8x128xf32>
      %228 = arith.truncf %227 : vector<8x128xf32> to vector<8x128xbf16>
      %c0_95 = arith.constant 0 : index
      %c0_96 = arith.constant 0 : index
      %229 = vector.load %arg16[%c0_95, %c0_96] : memref<8x128xbf16, #tpu.memory_space<vmem>>, vector<8x128xbf16>
      tpu.vector_store %arg16[%c0_95, %c0_96], %228 {strides = array<i32>} : memref<8x128xbf16, #tpu.memory_space<vmem>>, vector<8x128xbf16>,
    } else {
    }
    return
  }
  func.func @transform_0(%arg0: i32, %arg1: i32) -> (i32, i32) {
    %c0_i32 = arith.constant 0 : i32
    %c0_i32_0 = arith.constant 0 : i32
    return %arg0, %c0_i32 : i32, i32
  }
  func.func @transform_1(%arg0: i32, %arg1: i32) -> (i32, i32, i32) {
    %c0_i32 = arith.constant 0 : i32
    %c0_i32_0 = arith.constant 0 : i32
    %c0_i32_1 = arith.constant 0 : i32
    return %arg1, %c0_i32, %c0_i32_0 : i32, i32, i32
  }
  func.func @transform_2(%arg0: i32, %arg1: i32) -> (i32, i32, i32) {
    %c0_i32 = arith.constant 0 : i32
    %c0_i32_0 = arith.constant 0 : i32
    %c0_i32_1 = arith.constant 0 : i32
    return %arg1, %c0_i32, %c0_i32_0 : i32, i32, i32
  }
  func.func @transform_3(%arg0: i32, %arg1: i32) -> (i32, i32, i32) {
    %c0_i32 = arith.constant 0 : i32
    %c0_i32_0 = arith.constant 0 : i32
    %c0_i32_1 = arith.constant 0 : i32
    return %arg1, %c0_i32, %c0_i32_0 : i32, i32, i32
  }
  func.func @transform_4(%arg0: i32, %arg1: i32) -> (i32, i32, i32) {
    %c0_i32 = arith.constant 0 : i32
    %c0_i32_0 = arith.constant 0 : i32
    %c0_i32_1 = arith.constant 0 : i32
    return %arg1, %c0_i32, %c0_i32_0 : i32, i32, i32
  }
  func.func @transform_5(%arg0: i32, %arg1: i32) -> (i32, i32, i32) {
    %c0_i32 = arith.constant 0 : i32
    %c0_i32_0 = arith.constant 0 : i32
    %c0_i32_1 = arith.constant 0 : i32
    return %arg1, %c0_i32, %c0_i32_0 : i32, i32, i32
  }
  func.func @transform_6(%arg0: i32, %arg1: i32) -> (i32, i32, i32) {
    %c0_i32 = arith.constant 0 : i32
    %c0_i32_0 = arith.constant 0 : i32
    %c0_i32_1 = arith.constant 0 : i32
    return %arg1, %c0_i32, %c0_i32_0 : i32, i32, i32
  }
  func.func @transform_7(%arg0: i32, %arg1: i32) -> (i32, i32, i32) {
    %c0_i32 = arith.constant 0 : i32
    %c0_i32_0 = arith.constant 0 : i32
    %c0_i32_1 = arith.constant 0 : i32
    return %arg1, %c0_i32, %c0_i32_0 : i32, i32, i32
  }
  func.func @transform_8(%arg0: i32, %arg1: i32) -> (i32, i32, i32) {
    %c0_i32 = arith.constant 0 : i32
    %c0_i32_0 = arith.constant 0 : i32
    %c0_i32_1 = arith.constant 0 : i32
    return %arg1, %c0_i32, %c0_i32_0 : i32, i32, i32
  }
  func.func @transform_9(%arg0: i32, %arg1: i32) -> (i32, i32, i32) {
    %c0_i32 = arith.constant 0 : i32
    %c0_i32_0 = arith.constant 0 : i32
    %c0_i32_1 = arith.constant 0 : i32
    return %arg1, %c0_i32, %c0_i32_0 : i32, i32, i32
  }
  func.func @transform_10(%arg0: i32, %arg1: i32) -> (i32, i32, i32) {
    %c0_i32 = arith.constant 0 : i32
    %c0_i32_0 = arith.constant 0 : i32
    %c0_i32_1 = arith.constant 0 : i32
    return %arg1, %c0_i32, %c0_i32_0 : i32, i32, i32
  }
  func.func @transform_11(%arg0: i32, %arg1: i32) -> (i32, i32, i32) {
    %c0_i32 = arith.constant 0 : i32
    %c0_i32_0 = arith.constant 0 : i32
    %c0_i32_1 = arith.constant 0 : i32
    return %arg1, %c0_i32, %c0_i32_0 : i32, i32, i32
  }
  func.func @transform_12(%arg0: i32, %arg1: i32) -> (i32, i32) {
    %c0_i32 = arith.constant 0 : i32
    %c0_i32_0 = arith.constant 0 : i32
    %c0_i32_1 = arith.constant 0 : i32
    return %c0_i32, %c0_i32_0 : i32, i32
  }
  func.func @transform_13(%arg0: i32, %arg1: i32) -> (i32, i32) {
    %c0_i32 = arith.constant 0 : i32
    %c0_i32_0 = arith.constant 0 : i32
    %c0_i32_1 = arith.constant 0 : i32
    return %c0_i32, %c0_i32_0 : i32, i32
  }
  func.func @transform_14(%arg0: i32, %arg1: i32) -> (i32, i32) {
    %c0_i32 = arith.constant 0 : i32
    %c0_i32_0 = arith.constant 0 : i32
    return %arg0, %c0_i32 : i32, i32
  }
}

</mosaic_0001>

<llo_original>
// kernel: tpu_custom_call.1
$region0: #{tpu_custom_call.1}
  #allocation0 [shape = 'u32[]', space=smem, size = 0x4, offset = 0x4, fixed_abs, tag = 'smem constant byte address 0x4 - core index']
  #allocation1 [shape = 'u32[144,128]{1,0:T(1,128)}', space=vmem, size = 0x12000, scoped, tag = 'internal scratch']
  #allocation2 [shape = 'f32[8,128]{1,0:T(8,128)}', space=vmem, size = 0x1000, scoped, tag = 'scratch operand']
  %s0 = inlined_call_operand.hbm [shape: f32[16,128], index: 0, kind: input, shape index: {}]
  %s1 = inlined_call_operand.hbm [shape: f32[2,1,128], index: 1, kind: input, shape index: {}]
  %s2 = inlined_call_operand.vmem [shape: f32[2,1,128], index: 2, kind: input, shape index: {}]
  %s3 = inlined_call_operand.hbm [shape: bf16[2,128,384], index: 3, kind: input, shape index: {}]
  %s4 = inlined_call_operand.hbm [shape: bf16[2,128,128], index: 4, kind: input, shape index: {}]
  %s5 = inlined_call_operand.vmem [shape: f32[2,1,128], index: 5, kind: input, shape index: {}]
  %s6 = inlined_call_operand.vmem [shape: f32[2,1,128], index: 6, kind: input, shape index: {}]
  %s7 = inlined_call_operand.vmem [shape: f32[2,1,128], index: 7, kind: input, shape index: {}]
  %s8 = inlined_call_operand.hbm [shape: bf16[2,128,512], index: 8, kind: input, shape index: {}]
  %s9 = inlined_call_operand.vmem [shape: f32[2,1,512], index: 9, kind: input, shape index: {}]
  %s10 = inlined_call_operand.hbm [shape: bf16[2,512,128], index: 10, kind: input, shape index: {}]
  %s11 = inlined_call_operand.vmem [shape: f32[2,1,128], index: 11, kind: input, shape index: {}]
  %s12 = inlined_call_operand.vmem [shape: f32[1,128], index: 12, kind: input, shape index: {}]
  %s13 = inlined_call_operand.vmem [shape: f32[1,128], index: 13, kind: input, shape index: {}]
  %s14 = inlined_call_operand.hbm [shape: bf16[16,128], index: 14, kind: output, shape index: {}]
  %s15 = sld [smem:[#allocation0]]
  $region121: #{tpu_custom_call.1} parent=0
    _
  %s17 = ssub.s32 1, %s15
  %s18 = scalar_select 0, %s17, %s15
  $region1: #{tpu_custom_call.1} parent=0
    #allocation3 [shape = 'u8[8192]{0}', space=vmem, size = 0x2000, scoped, tag = 'input window, operand 0']
    #allocation4 [shape = 's32[2]{0}', space=sflag, size = 0x8, scoped, tag = 'scoped memory for tpu_custom_call.1']
    #allocation5 [shape = 's32[2]{0}', space=sflag, size = 0x8, scoped, tag = 'scoped memory for tpu_custom_call.1']
    #allocation6 [shape = 'u8[1024]{0}', space=vmem, size = 0x400, scoped, tag = 'input window, operand 1']
    #allocation7 [shape = 's32[2]{0}', space=sflag, size = 0x8, scoped, tag = 'scoped memory for tpu_custom_call.1']
    #allocation8 [shape = 'u8[196608]{0}', space=vmem, size = 0x30000, scoped, tag = 'input window, operand 3']
    #allocation9 [shape = 'u8[65536]{0}', space=vmem, size = 0x10000, scoped, tag = 'input window, operand 4']
    #allocation10 [shape = 's32[2]{0}', space=sflag, size = 0x8, scoped, tag = 'scoped memory for tpu_custom_call.1']
    #allocation11 [shape = 'u8[262144]{0}', space=vmem, size = 0x40000, scoped, tag = 'input window, operand 8']
    #allocation12 [shape = 'u8[262144]{0}', space=vmem, size = 0x40000, scoped, tag = 'input window, operand 10']
    #allocation13 [shape = 's32[2]{0}', space=sflag, size = 0x8, scoped, tag = 'scoped memory for tpu_custom_call.1']
    #allocation14 [shape = 'u8[4096]{0}', space=vmem, size = 0x1000, scoped, tag = 'output window, operand 0']
    %19 = vsyncpa [#allocation4], 0
    %s20 = scalar_lea.sflag [#allocation4], 1
    %21 = vsyncpa %s20, 0
    %22 = vsyncpa [#allocation7], 0
    %s23 = scalar_lea.sflag [#allocation7], 1
    %24 = vsyncpa %s23, 0
    %25 = vsyncpa [#allocation10], 0
    %s26 = scalar_lea.sflag [#allocation10], 1
    %27 = vsyncpa %s26, 0
    %28 = vsyncpa [#allocation13], 0
    %s29 = scalar_lea.sflag [#allocation13], 1
    %30 = vsyncpa %s29, 0
    %31 = vsyncpa [#allocation5], 0
    %s32 = scalar_lea.sflag [#allocation5], 1
    %33 = vsyncpa %s32, 0
    loop: start=0, step=1, limit=6
    $region2: #{tpu_custom_call.1} parent=1 // loop_pre_header
      _
    $region3: #{tpu_custom_call.1} parent=1 // loop_header
      %s35 = sphi 0, %s39
      %p36 = scmp.ge.s32.totalorder %s35, 6
      %s42 = sphi 0, %s54
      %s43 = sphi 0, %s50
      %s44 = sphi 0, %s42
      %s45 = sphi 0, %s43
      %s46 = sphi 0, %s44
      %s47 = sphi 0, %s45
      %s57 = sphi 0, %s59
      %s60 = sphi 0, %s57
      %s61 = sphi 0, %s60
      %s77 = sphi 0, %s61
      %s83 = sphi 0, %s85
      %s86 = sphi 0, %s83
      %s87 = sphi 0, %s86
      %s103 = sphi 0, %s87
      %s109 = sphi 0, %s111
      %s112 = sphi 0, %s109
      %s113 = sphi 0, %s112
      %s129 = sphi 0, %s113
      %s135 = sphi 0, %s137
      %s138 = sphi 0, %s135
      %s139 = sphi 0, %s138
      %s155 = sphi 0, %s139
      %s161 = sphi 0, %s163
      %s164 = sphi 0, %s161
      %s165 = sphi 0, %s164
      %s181 = sphi 0, %s165
      %s187 = sphi 0, %s189
      %s190 = sphi 0, %s187
      %s191 = sphi 0, %s190
      %s207 = sphi 0, %s191
      %s213 = sphi 0, %s215
      %s216 = sphi 0, %s213
      %s217 = sphi 0, %s216
      %s233 = sphi 0, %s217
      %s239 = sphi 0, %s241
      %s242 = sphi 0, %s239
      %s243 = sphi 0, %s242
      %s259 = sphi 0, %s243
      %s265 = sphi 0, %s267
      %s268 = sphi 0, %s265
      %s269 = sphi 0, %s268
      %s285 = sphi 0, %s269
      %s291 = sphi 0, %s293
      %s294 = sphi 0, %s291
      %s295 = sphi 0, %s294
      %s311 = sphi 0, %s295
      %s317 = sphi 0, %s319
      %s320 = sphi 0, %s317
      %s321 = sphi 0, %s320
      %s337 = sphi 0, %s321
      %s343 = sphi 0, %s345
      %s346 = sphi 0, %s343
      %s347 = sphi 0, %s346
      %s363 = sphi 0, %s347
      %s367 = sphi 0, %s367
      %s369 = sphi 0, %s367
      %s370 = sphi 0, %s369
      %s384 = sphi 0, %s370
      %s388 = sphi 0, %s388
      %s390 = sphi 0, %s388
      %s391 = sphi 0, %s390
      %s405 = sphi 0, %s391
      %s411 = sphi 0, %s413
      %s414 = sphi 0, %s411
      %s415 = sphi 0, %s414
      %s431 = sphi 0, %s415
    $region4: #{tpu_custom_call.1} parent=1 // loop_header_branch
      %38 = sbr.rel (%p36) target = $region8
    $region5: #{tpu_custom_call.1} parent=1 // loop_body
      %s40 = ssub.s32 %s35, 1
      %s41 = ssub.s32 %s35, 2
      %s48 = sadd.s32 1, %s43
      %p49 = scmp.ge.s32.totalorder %s48, 2
      %s50 = scalar_select %p49, 0, %s48
      %s51 = sadd.s32 1, %s42
      %s52 = scalar_select %p49, %s51, %s42
      %p53 = scmp.ge.s32.totalorder %s52, 2
      %s54 = scalar_select %p53, 0, %s52
      %s55 = ssub.s32 %s42, %s54
      %p56 = scmp.eq.s32.totalorder %s55, 0
      %s58 = sadd.s32 %s57, 1
      %s59 = scalar_select %p56, %s57, %s58
      %p62 = pneg %p56
      %p63 = scmp.eq.s32.totalorder %s35, 3
      %p64 = por %p62, %p63
      %p65 = scmp.ne.s32.totalorder %s57, %s60
      %p66 = scmp.eq.s32.totalorder %s35, 0
      %p67 = por %p65, %p66
      %p68 = scmp.ne.s32.totalorder %s57, %s60
      %p69 = scmp.eq.s32.totalorder %s40, 3
      %p70 = por %p68, %p69
      %p71 = scmp.ne.s32.totalorder %s60, %s61
      %p72 = scmp.eq.s32.totalorder %s40, 0
      %p73 = por %p71, %p72
      %p74 = scmp.ne.s32.totalorder %s60, %s61
      %p75 = scmp.eq.s32.totalorder %s41, 3
      %p76 = por %p74, %p75
      %p78 = scmp.ne.s32.totalorder %s61, %s77
      %p79 = scmp.eq.s32.totalorder %s41, 0
      %p80 = por %p78, %p79
      %s81 = ssub.s32 %s43, %s50
      %p82 = scmp.eq.s32.totalorder %s81, 0
      %s84 = sadd.s32 %s83, 1
      %s85 = scalar_select %p82, %s83, %s84
      %p88 = pneg %p82
      %p89 = scmp.eq.s32.totalorder %s35, 3
      %p90 = por %p88, %p89
      %p91 = scmp.ne.s32.totalorder %s83, %s86
      %p92 = scmp.eq.s32.totalorder %s35, 0
      %p93 = por %p91, %p92
      %p94 = scmp.ne.s32.totalorder %s83, %s86
      %p95 = scmp.eq.s32.totalorder %s40, 3
      %p96 = por %p94, %p95
      %p97 = scmp.ne.s32.totalorder %s86, %s87
      %p98 = scmp.eq.s32.totalorder %s40, 0
      %p99 = por %p97, %p98
      %p100 = scmp.ne.s32.totalorder %s86, %s87
      %p101 = scmp.eq.s32.totalorder %s41, 3
      %p102 = por %p100, %p101
      %p104 = scmp.ne.s32.totalorder %s87, %s103
      %p105 = scmp.eq.s32.totalorder %s41, 0
      %p106 = por %p104, %p105
      %s107 = ssub.s32 %s43, %s50
      %p108 = scmp.eq.s32.totalorder %s107, 0
      %s110 = sadd.s32 %s109, 1
      %s111 = scalar_select %p108, %s109, %s110
      %p114 = pneg %p108
      %p115 = scmp.eq.s32.totalorder %s35, 3
      %p116 = por %p114, %p115
      %p117 = scmp.ne.s32.totalorder %s109, %s112
      %p118 = scmp.eq.s32.totalorder %s35, 0
      %p119 = por %p117, %p118
      %p120 = scmp.ne.s32.totalorder %s109, %s112
      %p121 = scmp.eq.s32.totalorder %s40, 3
      %p122 = por %p120, %p121
      %p123 = scmp.ne.s32.totalorder %s112, %s113
      %p124 = scmp.eq.s32.totalorder %s40, 0
      %p125 = por %p123, %p124
      %p126 = scmp.ne.s32.totalorder %s112, %s113
      %p127 = scmp.eq.s32.totalorder %s41, 3
      %p128 = por %p126, %p127
      %p130 = scmp.ne.s32.totalorder %s113, %s129
      %p131 = scmp.eq.s32.totalorder %s41, 0
      %p132 = por %p130, %p131
      %s133 = ssub.s32 %s43, %s50
      %p134 = scmp.eq.s32.totalorder %s133, 0
      %s136 = sadd.s32 %s135, 1
      %s137 = scalar_select %p134, %s135, %s136
      %p140 = pneg %p134
      %p141 = scmp.eq.s32.totalorder %s35, 3
      %p142 = por %p140, %p141
      %p143 = scmp.ne.s32.totalorder %s135, %s138
      %p144 = scmp.eq.s32.totalorder %s35, 0
      %p145 = por %p143, %p144
      %p146 = scmp.ne.s32.totalorder %s135, %s138
      %p147 = scmp.eq.s32.totalorder %s40, 3
      %p148 = por %p146, %p147
      %p149 = scmp.ne.s32.totalorder %s138, %s139
      %p150 = scmp.eq.s32.totalorder %s40, 0
      %p151 = por %p149, %p150
      %p152 = scmp.ne.s32.totalorder %s138, %s139
      %p153 = scmp.eq.s32.totalorder %s41, 3
      %p154 = por %p152, %p153
      %p156 = scmp.ne.s32.totalorder %s139, %s155
      %p157 = scmp.eq.s32.totalorder %s41, 0
      %p158 = por %p156, %p157
      %s159 = ssub.s32 %s43, %s50
      %p160 = scmp.eq.s32.totalorder %s159, 0
      %s162 = sadd.s32 %s161, 1
      %s163 = scalar_select %p160, %s161, %s162
      %p166 = pneg %p160
      %p167 = scmp.eq.s32.totalorder %s35, 3
      %p168 = por %p166, %p167
      %p169 = scmp.ne.s32.totalorder %s161, %s164
      %p170 = scmp.eq.s32.totalorder %s35, 0
      %p171 = por %p169, %p170
      %p172 = scmp.ne.s32.totalorder %s161, %s164
      %p173 = scmp.eq.s32.totalorder %s40, 3
      %p174 = por %p172, %p173
      %p175 = scmp.ne.s32.totalorder %s164, %s165
      %p176 = scmp.eq.s32.totalorder %s40, 0
      %p177 = por %p175, %p176
      %p178 = scmp.ne.s32.totalorder %s164, %s165
      %p179 = scmp.eq.s32.totalorder %s41, 3
      %p180 = por %p178, %p179
      %p182 = scmp.ne.s32.totalorder %s165, %s181
      %p183 = scmp.eq.s32.totalorder %s41, 0
      %p184 = por %p182, %p183
      %s185 = ssub.s32 %s43, %s50
      %p186 = scmp.eq.s32.totalorder %s185, 0
      %s188 = sadd.s32 %s187, 1
      %s189 = scalar_select %p186, %s187, %s188
      %p192 = pneg %p186
      %p193 = scmp.eq.s32.totalorder %s35, 3
      %p194 = por %p192, %p193
      %p195 = scmp.ne.s32.totalorder %s187, %s190
      %p196 = scmp.eq.s32.totalorder %s35, 0
      %p197 = por %p195, %p196
      %p198 = scmp.ne.s32.totalorder %s187, %s190
      %p199 = scmp.eq.s32.totalorder %s40, 3
      %p200 = por %p198, %p199
      %p201 = scmp.ne.s32.totalorder %s190, %s191
      %p202 = scmp.eq.s32.totalorder %s40, 0
      %p203 = por %p201, %p202
      %p204 = scmp.ne.s32.totalorder %s190, %s191
      %p205 = scmp.eq.s32.totalorder %s41, 3
      %p206 = por %p204, %p205
      %p208 = scmp.ne.s32.totalorder %s191, %s207
      %p209 = scmp.eq.s32.totalorder %s41, 0
      %p210 = por %p208, %p209
      %s211 = ssub.s32 %s43, %s50
      %p212 = scmp.eq.s32.totalorder %s211, 0
      %s214 = sadd.s32 %s213, 1
      %s215 = scalar_select %p212, %s213, %s214
      %p218 = pneg %p212
      %p219 = scmp.eq.s32.totalorder %s35, 3
      %p220 = por %p218, %p219
      %p221 = scmp.ne.s32.totalorder %s213, %s216
      %p222 = scmp.eq.s32.totalorder %s35, 0
      %p223 = por %p221, %p222
      %p224 = scmp.ne.s32.totalorder %s213, %s216
      %p225 = scmp.eq.s32.totalorder %s40, 3
      %p226 = por %p224, %p225
      %p227 = scmp.ne.s32.totalorder %s216, %s217
      %p228 = scmp.eq.s32.totalorder %s40, 0
      %p229 = por %p227, %p228
      %p230 = scmp.ne.s32.totalorder %s216, %s217
      %p231 = scmp.eq.s32.totalorder %s41, 3
      %p232 = por %p230, %p231
      %p234 = scmp.ne.s32.totalorder %s217, %s233
      %p235 = scmp.eq.s32.totalorder %s41, 0
      %p236 = por %p234, %p235
      %s237 = ssub.s32 %s43, %s50
      %p238 = scmp.eq.s32.totalorder %s237, 0
      %s240 = sadd.s32 %s239, 1
      %s241 = scalar_select %p238, %s239, %s240
      %p244 = pneg %p238
      %p245 = scmp.eq.s32.totalorder %s35, 3
      %p246 = por %p244, %p245
      %p247 = scmp.ne.s32.totalorder %s239, %s242
      %p248 = scmp.eq.s32.totalorder %s35, 0
      %p249 = por %p247, %p248
      %p250 = scmp.ne.s32.totalorder %s239, %s242
      %p251 = scmp.eq.s32.totalorder %s40, 3
      %p252 = por %p250, %p251
      %p253 = scmp.ne.s32.totalorder %s242, %s243
      %p254 = scmp.eq.s32.totalorder %s40, 0
      %p255 = por %p253, %p254
      %p256 = scmp.ne.s32.totalorder %s242, %s243
      %p257 = scmp.eq.s32.totalorder %s41, 3
      %p258 = por %p256, %p257
      %p260 = scmp.ne.s32.totalorder %s243, %s259
      %p261 = scmp.eq.s32.totalorder %s41, 0
      %p262 = por %p260, %p261
      %s263 = ssub.s32 %s43, %s50
      %p264 = scmp.eq.s32.totalorder %s263, 0
      %s266 = sadd.s32 %s265, 1
      %s267 = scalar_select %p264, %s265, %s266
      %p270 = pneg %p264
      %p271 = scmp.eq.s32.totalorder %s35, 3
      %p272 = por %p270, %p271
      %p273 = scmp.ne.s32.totalorder %s265, %s268
      %p274 = scmp.eq.s32.totalorder %s35, 0
      %p275 = por %p273, %p274
      %p276 = scmp.ne.s32.totalorder %s265, %s268
      %p277 = scmp.eq.s32.totalorder %s40, 3
      %p278 = por %p276, %p277
      %p279 = scmp.ne.s32.totalorder %s268, %s269
      %p280 = scmp.eq.s32.totalorder %s40, 0
      %p281 = por %p279, %p280
      %p282 = scmp.ne.s32.totalorder %s268, %s269
      %p283 = scmp.eq.s32.totalorder %s41, 3
      %p284 = por %p282, %p283
      %p286 = scmp.ne.s32.totalorder %s269, %s285
      %p287 = scmp.eq.s32.totalorder %s41, 0
      %p288 = por %p286, %p287
      %s289 = ssub.s32 %s43, %s50
      %p290 = scmp.eq.s32.totalorder %s289, 0
      %s292 = sadd.s32 %s291, 1
      %s293 = scalar_select %p290, %s291, %s292
      %p296 = pneg %p290
      %p297 = scmp.eq.s32.totalorder %s35, 3
      %p298 = por %p296, %p297
      %p299 = scmp.ne.s32.totalorder %s291, %s294
      %p300 = scmp.eq.s32.totalorder %s35, 0
      %p301 = por %p299, %p300
      %p302 = scmp.ne.s32.totalorder %s291, %s294
      %p303 = scmp.eq.s32.totalorder %s40, 3
      %p304 = por %p302, %p303
      %p305 = scmp.ne.s32.totalorder %s294, %s295
      %p306 = scmp.eq.s32.totalorder %s40, 0
      %p307 = por %p305, %p306
      %p308 = scmp.ne.s32.totalorder %s294, %s295
      %p309 = scmp.eq.s32.totalorder %s41, 3
      %p310 = por %p308, %p309
      %p312 = scmp.ne.s32.totalorder %s295, %s311
      %p313 = scmp.eq.s32.totalorder %s41, 0
      %p314 = por %p312, %p313
      %s315 = ssub.s32 %s43, %s50
      %p316 = scmp.eq.s32.totalorder %s315, 0
      %s318 = sadd.s32 %s317, 1
      %s319 = scalar_select %p316, %s317, %s318
      %p322 = pneg %p316
      %p323 = scmp.eq.s32.totalorder %s35, 3
      %p324 = por %p322, %p323
      %p325 = scmp.ne.s32.totalorder %s317, %s320
      %p326 = scmp.eq.s32.totalorder %s35, 0
      %p327 = por %p325, %p326
      %p328 = scmp.ne.s32.totalorder %s317, %s320
      %p329 = scmp.eq.s32.totalorder %s40, 3
      %p330 = por %p328, %p329
      %p331 = scmp.ne.s32.totalorder %s320, %s321
      %p332 = scmp.eq.s32.totalorder %s40, 0
      %p333 = por %p331, %p332
      %p334 = scmp.ne.s32.totalorder %s320, %s321
      %p335 = scmp.eq.s32.totalorder %s41, 3
      %p336 = por %p334, %p335
      %p338 = scmp.ne.s32.totalorder %s321, %s337
      %p339 = scmp.eq.s32.totalorder %s41, 0
      %p340 = por %p338, %p339
      %s341 = ssub.s32 %s43, %s50
      %p342 = scmp.eq.s32.totalorder %s341, 0
      %s344 = sadd.s32 %s343, 1
      %s345 = scalar_select %p342, %s343, %s344
      %p348 = pneg %p342
      %p349 = scmp.eq.s32.totalorder %s35, 3
      %p350 = por %p348, %p349
      %p351 = scmp.ne.s32.totalorder %s343, %s346
      %p352 = scmp.eq.s32.totalorder %s35, 0
      %p353 = por %p351, %p352
      %p354 = scmp.ne.s32.totalorder %s343, %s346
      %p355 = scmp.eq.s32.totalorder %s40, 3
      %p356 = por %p354, %p355
      %p357 = scmp.ne.s32.totalorder %s346, %s347
      %p358 = scmp.eq.s32.totalorder %s40, 0
      %p359 = por %p357, %p358
      %p360 = scmp.ne.s32.totalorder %s346, %s347
      %p361 = scmp.eq.s32.totalorder %s41, 3
      %p362 = por %p360, %p361
      %p364 = scmp.ne.s32.totalorder %s347, %s363
      %p365 = scmp.eq.s32.totalorder %s41, 0
      %p366 = por %p364, %p365
      %s368 = sadd.s32 %s367, 1
      %p371 = scmp.eq.s32.totalorder %s35, 3
      %p372 = scmp.ne.s32.totalorder %s367, %s369
      %p373 = scmp.eq.s32.totalorder %s35, 0
      %p374 = por %p372, %p373
      %p375 = scmp.ne.s32.totalorder %s367, %s369
      %p376 = scmp.eq.s32.totalorder %s40, 3
      %p377 = por %p375, %p376
      %p378 = scmp.ne.s32.totalorder %s369, %s370
      %p379 = scmp.eq.s32.totalorder %s40, 0
      %p380 = por %p378, %p379
      %p381 = scmp.ne.s32.totalorder %s369, %s370
      %p382 = scmp.eq.s32.totalorder %s41, 3
      %p383 = por %p381, %p382
      %p385 = scmp.ne.s32.totalorder %s370, %s384
      %p386 = scmp.eq.s32.totalorder %s41, 0
      %p387 = por %p385, %p386
      %s389 = sadd.s32 %s388, 1
      %p392 = scmp.eq.s32.totalorder %s35, 3
      %p393 = scmp.ne.s32.totalorder %s388, %s390
      %p394 = scmp.eq.s32.totalorder %s35, 0
      %p395 = por %p393, %p394
      %p396 = scmp.ne.s32.totalorder %s388, %s390
      %p397 = scmp.eq.s32.totalorder %s40, 3
      %p398 = por %p396, %p397
      %p399 = scmp.ne.s32.totalorder %s390, %s391
      %p400 = scmp.eq.s32.totalorder %s40, 0
      %p401 = por %p399, %p400
      %p402 = scmp.ne.s32.totalorder %s390, %s391
      %p403 = scmp.eq.s32.totalorder %s41, 3
      %p404 = por %p402, %p403
      %p406 = scmp.ne.s32.totalorder %s391, %s405
      %p407 = scmp.eq.s32.totalorder %s41, 0
      %p408 = por %p406, %p407
      %s409 = ssub.s32 %s42, %s54
      %p410 = scmp.eq.s32.totalorder %s409, 0
      %s412 = sadd.s32 %s411, 1
      %s413 = scalar_select %p410, %s411, %s412
      %p416 = pneg %p410
      %p417 = scmp.eq.s32.totalorder %s35, 3
      %p418 = por %p416, %p417
      %p419 = scmp.ne.s32.totalorder %s411, %s414
      %p420 = scmp.eq.s32.totalorder %s35, 0
      %p421 = por %p419, %p420
      %p422 = scmp.ne.s32.totalorder %s411, %s414
      %p423 = scmp.eq.s32.totalorder %s40, 3
      %p424 = por %p422, %p423
      %p425 = scmp.ne.s32.totalorder %s414, %s415
      %p426 = scmp.eq.s32.totalorder %s40, 0
      %p427 = por %p425, %p426
      %p428 = scmp.ne.s32.totalorder %s414, %s415
      %p429 = scmp.eq.s32.totalorder %s41, 3
      %p430 = por %p428, %p429
      %p432 = scmp.ne.s32.totalorder %s415, %s431
      %p433 = scmp.eq.s32.totalorder %s41, 0
      %p434 = por %p432, %p433
      %p435 = scmp.le.s32.totalorder 1, %s35
      %p436 = scmp.lt.s32.totalorder %s35, 5
      %p437 = pnand %p435, %p436
      %p438 = pneg %p437
      // Predicated region
      $region9: #{tpu_custom_call.1} parent=5 // pred_check
        _
      $region10: #{tpu_custom_call.1} parent=5 // pred_check_branch
        %440 = sbr.rel (%p437) target = $region12
      $region11: #{tpu_custom_call.1} parent=5 // pred_region
        %s441 = ssub.s32 %s35, 1
        // Predicated region
        $region13: #{tpu_custom_call.1} parent=11 // pred_check
          %p442 = pneg %p380
        $region14: #{tpu_custom_call.1} parent=11 // pred_check_branch
          %444 = sbr.rel (%p442) target = $region16
        $region15: #{tpu_custom_call.1} parent=11 // pred_region
          _
        $region16: #{tpu_custom_call.1} parent=11 // pred_fallthru
          _
        // Predicated region
        $region17: #{tpu_custom_call.1} parent=11 // pred_check
          %p445 = pneg %p401
        $region18: #{tpu_custom_call.1} parent=11 // pred_check_branch
          %447 = sbr.rel (%p445) target = $region20
        $region19: #{tpu_custom_call.1} parent=11 // pred_region
          _
        $region20: #{tpu_custom_call.1} parent=11 // pred_fallthru
          _
      $region12: #{tpu_custom_call.1} parent=5 // pred_fallthru
        _
      %p448 = scmp.lt.s32.totalorder %s35, 4
      // Predicated region
      $region21: #{tpu_custom_call.1} parent=5 // pred_check
        %p449 = pneg %p448
      $region22: #{tpu_custom_call.1} parent=5 // pred_check_branch
        %451 = sbr.rel (%p449) target = $region24
      $region23: #{tpu_custom_call.1} parent=5 // pred_region
        // Predicated region
        $region25: #{tpu_custom_call.1} parent=23 // pred_check
          %p452 = pneg %p67
        $region26: #{tpu_custom_call.1} parent=23 // pred_check_branch
          %454 = sbr.rel (%p452) target = $region28
        $region27: #{tpu_custom_call.1} parent=23 // pred_region
          %s455 = sand.u32 %s57, 1
          %s456 = scalar_lea.sflag [#allocation4], %s455
          %s457 = sand.u32 %s57, 1
          %s458 = smul.addr %s457, 8
          %s459 = scalar_lea.vmem [#allocation3], %s458
          %s461 = ssub.s32 128, 128
          %462 = vsyncadd %s456, %s461
          %s463 = smul.addr %s42, 128
          %s464 = scalar_lea.hbm %s0, %s463
          %s466 = sshll.u32 %s459, 4
          %s467 = int_to_ptr.vmem [resolvable:$true] %s466
          %469 = dma.hbm_to_vmem [thread:$0]  %s464, 128, %s467, %s456
        $region28: #{tpu_custom_call.1} parent=23 // pred_fallthru
          _
        // Predicated region
        $region29: #{tpu_custom_call.1} parent=23 // pred_check
          %p470 = pneg %p93
        $region30: #{tpu_custom_call.1} parent=23 // pred_check_branch
          %472 = sbr.rel (%p470) target = $region32
        $region31: #{tpu_custom_call.1} parent=23 // pred_region
          %s473 = sand.u32 %s35, 1
          %s474 = scalar_lea.sflag [#allocation7], %s473
          %s475 = sand.u32 %s83, 1
          %s476 = scalar_lea.vmem [#allocation6], %s475
          %s478 = ssub.s32 16, 16
          %479 = vsyncadd %s474, %s478
          %s480 = smul.addr %s43, 16
          %s481 = scalar_lea.hbm %s1, %s480
          %s483 = sshll.u32 %s476, 4
          %s484 = int_to_ptr.vmem [resolvable:$true] %s483
          %486 = dma.hbm_to_vmem [thread:$0]  %s481, 16, %s484, %s474
        $region32: #{tpu_custom_call.1} parent=23 // pred_fallthru
          _
        // Predicated region
        $region33: #{tpu_custom_call.1} parent=23 // pred_check
          %p487 = pneg %p119
        $region34: #{tpu_custom_call.1} parent=23 // pred_check_branch
          %489 = sbr.rel (%p487) target = $region36
        $region35: #{tpu_custom_call.1} parent=23 // pred_region
          %p490 = scmp.lt.s32.totalorder %s43, 1
          %s491 = scalar_select %p490, %s43, 1
          %s492 = scalar_lea.vmem %s2, %s491
        $region36: #{tpu_custom_call.1} parent=23 // pred_fallthru
          _
        // Predicated region
        $region37: #{tpu_custom_call.1} parent=23 // pred_check
          %p493 = pneg %p145
        $region38: #{tpu_custom_call.1} parent=23 // pred_check_branch
          %495 = sbr.rel (%p493) target = $region40
        $region39: #{tpu_custom_call.1} parent=23 // pred_region
          %s496 = sand.u32 %s35, 1
          %s497 = scalar_lea.sflag [#allocation7], %s496
          %s498 = sand.u32 %s135, 1
          %s499 = smul.addr %s498, 192
          %s500 = scalar_lea.vmem [#allocation8], %s499
          %s502 = ssub.s32 3072, 3072
          %503 = vsyncadd %s497, %s502
          %s504 = smul.addr %s43, 48
          %s505 = smul.addr %s504, 64
          %s506 = scalar_lea.hbm %s3, %s505
          %s507 = sshll.u32 %s500, 4
          %s508 = int_to_ptr.vmem [resolvable:$true] %s507
          %513 = dma.hbm_to_vmem [thread:$0]  %s506, 3072, %s508, %s497, 192, 192, 12
        $region40: #{tpu_custom_call.1} parent=23 // pred_fallthru
          _
        // Predicated region
        $region41: #{tpu_custom_call.1} parent=23 // pred_check
          %p514 = pneg %p171
        $region42: #{tpu_custom_call.1} parent=23 // pred_check_branch
          %516 = sbr.rel (%p514) target = $region44
        $region43: #{tpu_custom_call.1} parent=23 // pred_region
          %s517 = sand.u32 %s35, 1
          %s518 = scalar_lea.sflag [#allocation10], %s517
          %s519 = sand.u32 %s161, 1
          %s520 = smul.addr %s519, 64
          %s521 = scalar_lea.vmem [#allocation9], %s520
          %s523 = ssub.s32 1024, 1024
          %524 = vsyncadd %s518, %s523
          %s525 = smul.addr %s43, 16
          %s526 = smul.addr %s525, 64
          %s527 = scalar_lea.hbm %s4, %s526
          %s528 = sshll.u32 %s521, 4
          %s529 = int_to_ptr.vmem [resolvable:$true] %s528
          %534 = dma.hbm_to_vmem [thread:$0]  %s527, 1024, %s529, %s518, 64, 64, 4
        $region44: #{tpu_custom_call.1} parent=23 // pred_fallthru
          _
        // Predicated region
        $region45: #{tpu_custom_call.1} parent=23 // pred_check
          %p535 = pneg %p197
        $region46: #{tpu_custom_call.1} parent=23 // pred_check_branch
          %537 = sbr.rel (%p535) target = $region48
        $region47: #{tpu_custom_call.1} parent=23 // pred_region
          %p538 = scmp.lt.s32.totalorder %s43, 1
          %s539 = scalar_select %p538, %s43, 1
          %s540 = scalar_lea.vmem %s5, %s539
        $region48: #{tpu_custom_call.1} parent=23 // pred_fallthru
          _
        // Predicated region
        $region49: #{tpu_custom_call.1} parent=23 // pred_check
          %p541 = pneg %p223
        $region50: #{tpu_custom_call.1} parent=23 // pred_check_branch
          %543 = sbr.rel (%p541) target = $region52
        $region51: #{tpu_custom_call.1} parent=23 // pred_region
          %p544 = scmp.lt.s32.totalorder %s43, 1
          %s545 = scalar_select %p544, %s43, 1
          %s546 = scalar_lea.vmem %s6, %s545
        $region52: #{tpu_custom_call.1} parent=23 // pred_fallthru
          _
        // Predicated region
        $region53: #{tpu_custom_call.1} parent=23 // pred_check
          %p547 = pneg %p249
        $region54: #{tpu_custom_call.1} parent=23 // pred_check_branch
          %549 = sbr.rel (%p547) target = $region56
        $region55: #{tpu_custom_call.1} parent=23 // pred_region
          %p550 = scmp.lt.s32.totalorder %s43, 1
          %s551 = scalar_select %p550, %s43, 1
          %s552 = scalar_lea.vmem %s7, %s551
        $region56: #{tpu_custom_call.1} parent=23 // pred_fallthru
          _
        // Predicated region
        $region57: #{tpu_custom_call.1} parent=23 // pred_check
          %p553 = pneg %p275
        $region58: #{tpu_custom_call.1} parent=23 // pred_check_branch
          %555 = sbr.rel (%p553) target = $region60
        $region59: #{tpu_custom_call.1} parent=23 // pred_region
          %s556 = sand.u32 %s35, 1
          %s557 = scalar_lea.sflag [#allocation10], %s556
          %s558 = sand.u32 %s265, 1
          %s559 = smul.addr %s558, 256
          %s560 = scalar_lea.vmem [#allocation11], %s559
          %s562 = ssub.s32 4096, 4096
          %563 = vsyncadd %s557, %s562
          %s564 = smul.addr %s43, 64
          %s565 = smul.addr %s564, 64
          %s566 = scalar_lea.hbm %s8, %s565
          %s567 = sshll.u32 %s560, 4
          %s568 = int_to_ptr.vmem [resolvable:$true] %s567
          %573 = dma.hbm_to_vmem [thread:$0]  %s566, 4096, %s568, %s557, 256, 256, 16
        $region60: #{tpu_custom_call.1} parent=23 // pred_fallthru
          _
        // Predicated region
        $region61: #{tpu_custom_call.1} parent=23 // pred_check
          %p574 = pneg %p301
        $region62: #{tpu_custom_call.1} parent=23 // pred_check_branch
          %576 = sbr.rel (%p574) target = $region64
        $region63: #{tpu_custom_call.1} parent=23 // pred_region
          %p577 = scmp.lt.s32.totalorder %s43, 1
          %s578 = scalar_select %p577, %s43, 1
          %s579 = smul.addr %s578, 4
          %s580 = scalar_lea.vmem %s9, %s579
        $region64: #{tpu_custom_call.1} parent=23 // pred_fallthru
          _
        // Predicated region
        $region65: #{tpu_custom_call.1} parent=23 // pred_check
          %p581 = pneg %p327
        $region66: #{tpu_custom_call.1} parent=23 // pred_check_branch
          %583 = sbr.rel (%p581) target = $region68
        $region67: #{tpu_custom_call.1} parent=23 // pred_region
          %s584 = sand.u32 %s317, 1
          %s585 = scalar_lea.sflag [#allocation13], %s584
          %s586 = sand.u32 %s317, 1
          %s587 = smul.addr %s586, 256
          %s588 = scalar_lea.vmem [#allocation12], %s587
          %s590 = ssub.s32 4096, 4096
          %591 = vsyncadd %s585, %s590
          %s592 = smul.addr %s43, 64
          %s593 = smul.addr %s592, 64
          %s594 = scalar_lea.hbm %s10, %s593
          %s595 = sshll.u32 %s588, 4
          %s596 = int_to_ptr.vmem [resolvable:$true] %s595
          %601 = dma.hbm_to_vmem [thread:$0]  %s594, 4096, %s596, %s585, 64, 64, 4
        $region68: #{tpu_custom_call.1} parent=23 // pred_fallthru
          _
        // Predicated region
        $region69: #{tpu_custom_call.1} parent=23 // pred_check
          %p602 = pneg %p353
        $region70: #{tpu_custom_call.1} parent=23 // pred_check_branch
          %604 = sbr.rel (%p602) target = $region72
        $region71: #{tpu_custom_call.1} parent=23 // pred_region
          %p605 = scmp.lt.s32.totalorder %s43, 1
          %s606 = scalar_select %p605, %s43, 1
          %s607 = scalar_lea.vmem %s11, %s606
        $region72: #{tpu_custom_call.1} parent=23 // pred_fallthru
          _
      $region24: #{tpu_custom_call.1} parent=5 // pred_fallthru
        _
      %p608 = scmp.le.s32.totalorder 1, %s35
      %p609 = scmp.lt.s32.totalorder %s35, 5
      %p610 = pnand %p608, %p609
      %p611 = pneg %p610
      // Predicated region
      $region73: #{tpu_custom_call.1} parent=5 // pred_check
        _
      $region74: #{tpu_custom_call.1} parent=5 // pred_check_branch
        %613 = sbr.rel (%p610) target = $region76
      $region75: #{tpu_custom_call.1} parent=5 // pred_region
        %s614 = ssub.s32 %s35, 1
        %s615 = sand.u32 %s60, 1
        %s616 = scalar_lea.sflag [#allocation4], %s615
        %s617 = sand.u32 %s60, 1
        %s618 = smul.addr %s617, 8
        %s619 = scalar_lea.vmem [#allocation3], %s618
        // Predicated region
        $region77: #{tpu_custom_call.1} parent=75 // pred_check
          %p620 = pneg %p73
        $region78: #{tpu_custom_call.1} parent=75 // pred_check_branch
          %622 = sbr.rel (%p620) target = $region80
        $region79: #{tpu_custom_call.1} parent=75 // pred_region
          %623 = dma.done %s616, 128
        $region80: #{tpu_custom_call.1} parent=75 // pred_fallthru
          _
        %s624 = sand.u32 %s40, 1
        %s625 = scalar_lea.sflag [#allocation7], %s624
        %s626 = sand.u32 %s86, 1
        %s627 = scalar_lea.vmem [#allocation6], %s626
        // Predicated region
        $region81: #{tpu_custom_call.1} parent=75 // pred_check
          %p628 = pneg %p99
        $region82: #{tpu_custom_call.1} parent=75 // pred_check_branch
          %630 = sbr.rel (%p628) target = $region84
        $region83: #{tpu_custom_call.1} parent=75 // pred_region
          %631 = dma.done %s625, 16
        $region84: #{tpu_custom_call.1} parent=75 // pred_fallthru
          _
        %s632 = sand.u32 %s40, 1
        %s633 = scalar_lea.sflag [#allocation7], %s632
        %s634 = sand.u32 %s138, 1
        %s635 = smul.addr %s634, 192
        %s636 = scalar_lea.vmem [#allocation8], %s635
        // Predicated region
        $region85: #{tpu_custom_call.1} parent=75 // pred_check
          %p637 = pneg %p151
        $region86: #{tpu_custom_call.1} parent=75 // pred_check_branch
          %639 = sbr.rel (%p637) target = $region88
        $region87: #{tpu_custom_call.1} parent=75 // pred_region
          %640 = dma.done %s633, 3072
        $region88: #{tpu_custom_call.1} parent=75 // pred_fallthru
          _
        %s641 = sand.u32 %s40, 1
        %s642 = scalar_lea.sflag [#allocation10], %s641
        %s643 = sand.u32 %s164, 1
        %s644 = smul.addr %s643, 64
        %s645 = scalar_lea.vmem [#allocation9], %s644
        // Predicated region
        $region89: #{tpu_custom_call.1} parent=75 // pred_check
          %p646 = pneg %p177
        $region90: #{tpu_custom_call.1} parent=75 // pred_check_branch
          %648 = sbr.rel (%p646) target = $region92
        $region91: #{tpu_custom_call.1} parent=75 // pred_region
          %649 = dma.done %s642, 1024
        $region92: #{tpu_custom_call.1} parent=75 // pred_fallthru
          _
        %s650 = sand.u32 %s40, 1
        %s651 = scalar_lea.sflag [#allocation10], %s650
        %s652 = sand.u32 %s268, 1
        %s653 = smul.addr %s652, 256
        %s654 = scalar_lea.vmem [#allocation11], %s653
        // Predicated region
        $region93: #{tpu_custom_call.1} parent=75 // pred_check
          %p655 = pneg %p281
        $region94: #{tpu_custom_call.1} parent=75 // pred_check_branch
          %657 = sbr.rel (%p655) target = $region96
        $region95: #{tpu_custom_call.1} parent=75 // pred_region
          %658 = dma.done %s651, 4096
        $region96: #{tpu_custom_call.1} parent=75 // pred_fallthru
          _
        %s659 = sand.u32 %s320, 1
        %s660 = scalar_lea.sflag [#allocation13], %s659
        %s661 = sand.u32 %s320, 1
        %s662 = smul.addr %s661, 256
        %s663 = scalar_lea.vmem [#allocation12], %s662
        // Predicated region
        $region97: #{tpu_custom_call.1} parent=75 // pred_check
          %p664 = pneg %p333
        $region98: #{tpu_custom_call.1} parent=75 // pred_check_branch
          %666 = sbr.rel (%p664) target = $region100
        $region99: #{tpu_custom_call.1} parent=75 // pred_region
          %667 = dma.done %s660, 4096
        $region100: #{tpu_custom_call.1} parent=75 // pred_fallthru
          _
        %s668 = sand.u32 %s60, 1
        %s669 = scalar_lea.sflag [#allocation4], %s668
        %s670 = sand.u32 %s60, 1
        %s671 = smul.addr %s670, 8
        %s672 = scalar_lea.vmem [#allocation3], %s671
        %p673 = pneg %p73
        %p674 = pneg %p70
        %s675 = sand.u32 %s40, 1
        %s676 = scalar_lea.sflag [#allocation7], %s675
        %s677 = sand.u32 %s86, 1
        %s678 = scalar_lea.vmem [#allocation6], %s677
        %p679 = pneg %p99
        %p680 = pneg %p96
        %p681 = scmp.lt.s32.totalorder %s45, 1
        %s682 = scalar_select %p681, %s45, 1
        %s683 = scalar_lea.vmem %s2, %s682
        %p684 = pneg %p125
        %p685 = pneg %p122
        %s686 = sand.u32 %s40, 1
        %s687 = scalar_lea.sflag [#allocation7], %s686
        %s688 = sand.u32 %s138, 1
        %s689 = smul.addr %s688, 192
        %s690 = scalar_lea.vmem [#allocation8], %s689
        %p691 = pneg %p151
        %p692 = pneg %p148
        %s693 = sand.u32 %s40, 1
        %s694 = scalar_lea.sflag [#allocation10], %s693
        %s695 = sand.u32 %s164, 1
        %s696 = smul.addr %s695, 64
        %s697 = scalar_lea.vmem [#allocation9], %s696
        %p698 = pneg %p177
        %p699 = pneg %p174
        %p700 = scmp.lt.s32.totalorder %s45, 1
        %s701 = scalar_select %p700, %s45, 1
        %s702 = scalar_lea.vmem %s5, %s701
        %p703 = pneg %p203
        %p704 = pneg %p200
        %p705 = scmp.lt.s32.totalorder %s45, 1
        %s706 = scalar_select %p705, %s45, 1
        %s707 = scalar_lea.vmem %s6, %s706
        %p708 = pneg %p229
        %p709 = pneg %p226
        %p710 = scmp.lt.s32.totalorder %s45, 1
        %s711 = scalar_select %p710, %s45, 1
        %s712 = scalar_lea.vmem %s7, %s711
        %p713 = pneg %p255
        %p714 = pneg %p252
        %s715 = sand.u32 %s40, 1
        %s716 = scalar_lea.sflag [#allocation10], %s715
        %s717 = sand.u32 %s268, 1
        %s718 = smul.addr %s717, 256
        %s719 = scalar_lea.vmem [#allocation11], %s718
        %p720 = pneg %p281
        %p721 = pneg %p278
        %p722 = scmp.lt.s32.totalorder %s45, 1
        %s723 = scalar_select %p722, %s45, 1
        %s724 = smul.addr %s723, 4
        %s725 = scalar_lea.vmem %s9, %s724
        %p726 = pneg %p307
        %p727 = pneg %p304
        %s728 = sand.u32 %s320, 1
        %s729 = scalar_lea.sflag [#allocation13], %s728
        %s730 = sand.u32 %s320, 1
        %s731 = smul.addr %s730, 256
        %s732 = scalar_lea.vmem [#allocation12], %s731
        %p733 = pneg %p333
        %p734 = pneg %p330
        %p735 = scmp.lt.s32.totalorder %s45, 1
        %s736 = scalar_select %p735, %s45, 1
        %s737 = scalar_lea.vmem %s11, %s736
        %p738 = pneg %p359
        %p739 = pneg %p356
        %p740 = pneg %p380
        %p741 = pneg %p377
        %p742 = pneg %p401
        %p743 = pneg %p398
        %p744 = pneg %p427
        %p745 = pneg %p424
        %s746 = sand.u32 %s414, 1
        %s747 = scalar_lea.sflag [#allocation5], %s746
        %s748 = sand.u32 %s414, 1
        %s749 = smul.addr %s748, 4
        %s750 = scalar_lea.vmem [#allocation14], %s749
        %p751 = scmp.lt.s32.totalorder %s45, 1
        %s752 = scalar_select %p751, %s45, 1
        %s753 = scalar_lea.vmem %s2, %s752
        %p754 = scmp.lt.s32.totalorder %s45, 1
        %s755 = scalar_select %p754, %s45, 1
        %s756 = scalar_lea.vmem %s5, %s755
        %p757 = scmp.lt.s32.totalorder %s45, 1
        %s758 = scalar_select %p757, %s45, 1
        %s759 = scalar_lea.vmem %s6, %s758
        %p760 = scmp.lt.s32.totalorder %s45, 1
        %s761 = scalar_select %p760, %s45, 1
        %s762 = scalar_lea.vmem %s7, %s761
        %p763 = scmp.lt.s32.totalorder %s45, 1
        %s764 = scalar_select %p763, %s45, 1
        %s765 = smul.addr %s764, 4
        %s766 = scalar_lea.vmem %s9, %s765
        %p767 = scmp.lt.s32.totalorder %s45, 1
        %s768 = scalar_select %p767, %s45, 1
        %s769 = scalar_lea.vmem %s11, %s768
        %p771 = scmp.eq.s32.totalorder %s45, 0
        // Predicated region
        $region101: #{tpu_custom_call.1} parent=75 // pred_check
          %p772 = pneg %p771
        $region102: #{tpu_custom_call.1} parent=75 // pred_check_branch
          %774 = sbr.rel (%p772) target = $region104
        $region103: #{tpu_custom_call.1} parent=75 // pred_region
          %v775 = vld [vmem:[%s619] sm:$0xff]
          %776 = vst [vmem:[#allocation2] sm:$0xff] %v775
        $region104: #{tpu_custom_call.1} parent=75 // pred_fallthru
          _
        %v777 = vld [vmem:[#allocation2] sm:$0xff]
        %v778 = vlaneseq
        %v779 = vshrl.u32 %v778, 7
        %v780 = vlaneseq
        %v781 = vand.u32 %v780, 127
        %vm782 = vcmp.le.s32.totalorder %v781, %v779
        %v783 = vld [vmem:[%s627] sm:$0x1]
        %v784 = vld [vmem:[%s753] sm:$0x1]
        %785 = vadd.xlane.f32.xlu0 %v777
        %v786 = vpop.xlane.xlu0 %785
        %v787 = vrcp.pop 128.0
        %v788 = vmul.f32 %v786, %v787
        %v789 = vsub.f32 %v777, %v788
        %v790 = vmul.f32 %v789, %v789
        %791 = vadd.xlane.f32.xlu0 %v790
        %v792 = vpop.xlane.xlu0 %791
        %v793 = vmul.f32 %v792, %v787
        %v794 = vadd.f32 %v793, 1e-05
        %v795 = vrsqrt.pop %v794
        %v796 = vmul.f32 %v789, %v795
        %v798 = vlaneseq
        %v799 = vshrl.u32 %v798, 7
        %v800 = vsub.s32 0, %v799
        %v801 = vrot.slane %v783, %v800
        %v803 = vmul.f32 %v796, %v801
        %v805 = vlaneseq
        %v806 = vshrl.u32 %v805, 7
        %v807 = vsub.s32 0, %v806
        %v808 = vrot.slane %v784, %v807
        %v810 = vadd.f32 %v803, %v808
        %v811 = vpack.c.bf16 %v810, %v810
        %v812 = vld [vmem:[%s636] sm:$0xff]
        %v813 = vld [vmem:[%s636 + $0x8] sm:$0xf]
        %v814 = vld [vmem:[%s636 + $0xc] sm:$0xff]
        %v815 = vld [vmem:[%s636 + $0x14] sm:$0xf]
        %v816 = vld [vmem:[%s636 + $0x18] sm:$0xff]
        %v817 = vld [vmem:[%s636 + $0x20] sm:$0xf]
        %v818 = vld [vmem:[%s636 + $0x24] sm:$0xff]
        %v819 = vld [vmem:[%s636 + $0x2c] sm:$0xf]
        %v820 = vld [vmem:[%s636 + $0x30] sm:$0xff]
        %v821 = vld [vmem:[%s636 + $0x38] sm:$0xf]
        %v822 = vld [vmem:[%s636 + $0x3c] sm:$0xff]
        %v823 = vld [vmem:[%s636 + $0x44] sm:$0xf]
        %v824 = vld [vmem:[%s636 + $0x48] sm:$0xff]
        %v825 = vld [vmem:[%s636 + $0x50] sm:$0xf]
        %v826 = vld [vmem:[%s636 + $0x54] sm:$0xff]
        %v827 = vld [vmem:[%s636 + $0x5c] sm:$0xf]
        %v828 = vld [vmem:[%s636 + $0x60] sm:$0xff]
        %v829 = vld [vmem:[%s636 + $0x68] sm:$0xf]
        %v830 = vld [vmem:[%s636 + $0x6c] sm:$0xff]
        %v831 = vld [vmem:[%s636 + $0x74] sm:$0xf]
        %v832 = vld [vmem:[%s636 + $0x78] sm:$0xff]
        %v833 = vld [vmem:[%s636 + $0x80] sm:$0xf]
        %v834 = vld [vmem:[%s636 + $0x84] sm:$0xff]
        %v835 = vld [vmem:[%s636 + $0x8c] sm:$0xf]
        %v836 = vld [vmem:[%s636 + $0x90] sm:$0xff]
        %v837 = vld [vmem:[%s636 + $0x98] sm:$0xf]
        %v838 = vld [vmem:[%s636 + $0x9c] sm:$0xff]
        %v839 = vld [vmem:[%s636 + $0xa4] sm:$0xf]
        %v840 = vld [vmem:[%s636 + $0xa8] sm:$0xff]
        %v841 = vld [vmem:[%s636 + $0xb0] sm:$0xf]
        %v842 = vld [vmem:[%s636 + $0xb4] sm:$0xff]
        %v843 = vld [vmem:[%s636 + $0xbc] sm:$0xf]
        %v876 = vunpack.c.l.b16 %v812
        %v877 = vunpack.c.h.b16 %v812
        %v878 = vunpack.c.l.b16 %v813
        %v879 = vunpack.c.l.b16 %v814
        %v880 = vunpack.c.h.b16 %v814
        %v881 = vunpack.c.l.b16 %v815
        %v882 = vunpack.c.l.b16 %v816
        %v883 = vunpack.c.h.b16 %v816
        %v884 = vunpack.c.l.b16 %v817
        %v885 = vunpack.c.l.b16 %v818
        %v886 = vunpack.c.h.b16 %v818
        %v887 = vunpack.c.l.b16 %v819
        %v888 = vunpack.c.l.b16 %v820
        %v889 = vunpack.c.h.b16 %v820
        %v890 = vunpack.c.l.b16 %v821
        %v891 = vunpack.c.l.b16 %v822
        %v892 = vunpack.c.h.b16 %v822
        %v893 = vunpack.c.l.b16 %v823
        %v894 = vunpack.c.l.b16 %v824
        %v895 = vunpack.c.h.b16 %v824
        %v896 = vunpack.c.l.b16 %v825
        %v897 = vunpack.c.l.b16 %v826
        %v898 = vunpack.c.h.b16 %v826
        %v899 = vunpack.c.l.b16 %v827
        %v900 = vunpack.c.l.b16 %v828
        %v901 = vunpack.c.h.b16 %v828
        %v902 = vunpack.c.l.b16 %v829
        %v903 = vunpack.c.l.b16 %v830
        %v904 = vunpack.c.h.b16 %v830
        %v905 = vunpack.c.l.b16 %v831
        %v906 = vunpack.c.l.b16 %v832
        %v907 = vunpack.c.h.b16 %v832
        %v908 = vunpack.c.l.b16 %v833
        %v909 = vunpack.c.l.b16 %v834
        %v910 = vunpack.c.h.b16 %v834
        %v911 = vunpack.c.l.b16 %v835
        %v912 = vunpack.c.l.b16 %v836
        %v913 = vunpack.c.h.b16 %v836
        %v914 = vunpack.c.l.b16 %v837
        %v915 = vunpack.c.l.b16 %v838
        %v916 = vunpack.c.h.b16 %v838
        %v917 = vunpack.c.l.b16 %v839
        %v918 = vunpack.c.l.b16 %v840
        %v919 = vunpack.c.h.b16 %v840
        %v920 = vunpack.c.l.b16 %v841
        %v921 = vunpack.c.l.b16 %v842
        %v922 = vunpack.c.h.b16 %v842
        %v923 = vunpack.c.l.b16 %v843
        %v924 = vpack.c.b16 %v879, %v876
        %v925 = vpack.c.b16 %v880, %v877
        %v926 = vpack.c.b16 %v881, %v878
        %v927 = vpack.c.b16 %v885, %v882
        %v928 = vpack.c.b16 %v886, %v883
        %v929 = vpack.c.b16 %v887, %v884
        %v930 = vpack.c.b16 %v891, %v888
        %v931 = vpack.c.b16 %v892, %v889
        %v932 = vpack.c.b16 %v893, %v890
        %v933 = vpack.c.b16 %v897, %v894
        %v934 = vpack.c.b16 %v898, %v895
        %v935 = vpack.c.b16 %v899, %v896
        %v936 = vpack.c.b16 %v903, %v900
        %v937 = vpack.c.b16 %v904, %v901
        %v938 = vpack.c.b16 %v905, %v902
        %v939 = vpack.c.b16 %v909, %v906
        %v940 = vpack.c.b16 %v910, %v907
        %v941 = vpack.c.b16 %v911, %v908
        %v942 = vpack.c.b16 %v915, %v912
        %v943 = vpack.c.b16 %v916, %v913
        %v944 = vpack.c.b16 %v917, %v914
        %v945 = vpack.c.b16 %v921, %v918
        %v946 = vpack.c.b16 %v922, %v919
        %v947 = vpack.c.b16 %v923, %v920
        %972 = vmatprep.subr.bf16.mxu0 %v946
        %973 = vmatpush1.bf16.msra.mxu0 %v945
        %974 = vmatprep.subr.bf16.mxu0 %v943
        %975 = vmatpush1.bf16.msra.mxu0 %v942
        %976 = vmatprep.subr.bf16.mxu0 %v940
        %977 = vmatpush1.bf16.msra.mxu0 %v939
        %978 = vmatprep.subr.bf16.mxu0 %v937
        %979 = vmatpush1.bf16.msra.mxu0 %v936
        %980 = vmatprep.subr.bf16.mxu0 %v934
        %981 = vmatpush1.bf16.msra.mxu0 %v933
        %982 = vmatprep.subr.bf16.mxu0 %v931
        %983 = vmatpush1.bf16.msra.mxu0 %v930
        %984 = vmatprep.subr.bf16.mxu0 %v928
        %985 = vmatpush1.bf16.msra.mxu0 %v927
        %986 = vmatprep.subr.bf16.mxu0 %v925
        %987 = vmatpush1.bf16.msra.mxu0 %v924
        %988 = vmatprep.subr.bf16.mxu0 0
        %989 = vmatpush2.bf16.msra.mxu0 0
        %990 = vmatprep.subr.bf16.mxu0 0
        %991 = vmatpush2.bf16.msra.mxu0 0
        %992 = vmatprep.subr.bf16.mxu0 0
        %993 = vmatpush2.bf16.msra.mxu0 0
        %994 = vmatprep.subr.bf16.mxu0 0
        %995 = vmatpush2.bf16.msra.mxu0 0
        %996 = vmatprep.subr.bf16.mxu0 0
        %997 = vmatpush2.bf16.msra.mxu0 0
        %998 = vmatprep.subr.bf16.mxu0 0
        %999 = vmatpush2.bf16.msra.mxu0 0
        %1000 = vmatprep.subr.bf16.mxu0 0
        %1001 = vmatpush2.bf16.msra.mxu0 0
        %1002 = vmatprep.subr.bf16.mxu0 0
        %1003 = vmatpush2.bf16.msra.mxu0 0
        %1004 = vmatprep.mubr.bf16.mxu0 0
        %1005 = vmatmul.mubr.bf16.gmra.mxu0 %v811
        %v1006 = vpop.f32.mrf.mxu0
        %v1007 = vadd.f32 0.0, %v1006
        %v1008 = vpop.f32.mrf.mxu0
        %v1009 = vadd.f32 0.0, %v1008
        %v1010 = vpop.f32.mrf.mxu0
        %v1011 = vpop.f32.mrf.mxu0
        %1012 = vdwg.mxu0
        %1013 = vmatprep.subr.bf16.mxu0 0
        %1014 = vmatpush1.bf16.msra.mxu0 %v947
        %1015 = vmatprep.subr.bf16.mxu0 0
        %1016 = vmatpush1.bf16.msra.mxu0 %v944
        %1017 = vmatprep.subr.bf16.mxu0 0
        %1018 = vmatpush1.bf16.msra.mxu0 %v941
        %1019 = vmatprep.subr.bf16.mxu0 0
        %1020 = vmatpush1.bf16.msra.mxu0 %v938
        %1021 = vmatprep.subr.bf16.mxu0 0
        %1022 = vmatpush1.bf16.msra.mxu0 %v935
        %1023 = vmatprep.subr.bf16.mxu0 0
        %1024 = vmatpush1.bf16.msra.mxu0 %v932
        %1025 = vmatprep.subr.bf16.mxu0 0
        %1026 = vmatpush1.bf16.msra.mxu0 %v929
        %1027 = vmatprep.subr.bf16.mxu0 0
        %1028 = vmatpush1.bf16.msra.mxu0 %v926
        %1029 = vmatprep.subr.bf16.mxu0 0
        %1030 = vmatpush2.bf16.msra.mxu0 0
        %1031 = vmatprep.subr.bf16.mxu0 0
        %1032 = vmatpush2.bf16.msra.mxu0 0
        %1033 = vmatprep.subr.bf16.mxu0 0
        %1034 = vmatpush2.bf16.msra.mxu0 0
        %1035 = vmatprep.subr.bf16.mxu0 0
        %1036 = vmatpush2.bf16.msra.mxu0 0
        %1037 = vmatprep.subr.bf16.mxu0 0
        %1038 = vmatpush2.bf16.msra.mxu0 0
        %1039 = vmatprep.subr.bf16.mxu0 0
        %1040 = vmatpush2.bf16.msra.mxu0 0
        %1041 = vmatprep.subr.bf16.mxu0 0
        %1042 = vmatpush2.bf16.msra.mxu0 0
        %1043 = vmatprep.subr.bf16.mxu0 0
        %1044 = vmatpush2.bf16.msra.mxu0 0
        %1045 = vmatprep.mubr.bf16.mxu0 0
        %1046 = vmatmul.mubr.bf16.gmra.mxu0 %v811
        %v1047 = vpop.f32.mrf.mxu0
        %v1048 = vadd.f32 0.0, %v1047
        %v1049 = vpop.f32.mrf.mxu0
        %v1050 = vpop.f32.mrf.mxu0
        %v1051 = vpop.f32.mrf.mxu0
        %1052 = vdwg.mxu0
        %v1053 = vpack.c.bf16 %v1007, %v1007
        %v1054 = vpack.c.bf16 %v1009, %v1009
        %v1055 = vpack.c.bf16 %v1048, %v1048
        %vm1056 = vcmask 261120
        %v1058 = vsel %vm1056, %v1053, 0
        %v1061 = vsel %vm1056, %v1054, 0
        %1063 = vmatprep.subr.bf16.mxu0 0
        %1064 = vmatpush1.bf16.xpose.msra.mxu0 0
        %1065 = vmatprep.subr.bf16.mxu0 0
        %1066 = vmatpush1.bf16.xpose.msra.mxu0 0
        %1067 = vmatprep.subr.bf16.mxu0 0
        %1068 = vmatpush1.bf16.xpose.msra.mxu0 0
        %1069 = vmatprep.subr.bf16.mxu0 0
        %1070 = vmatpush1.bf16.xpose.msra.mxu0 0
        %1071 = vmatprep.subr.bf16.mxu0 0
        %1072 = vmatpush1.bf16.xpose.msra.mxu0 0
        %1073 = vmatprep.subr.bf16.mxu0 0
        %1074 = vmatpush1.bf16.xpose.msra.mxu0 0
        %1075 = vmatprep.subr.bf16.mxu0 0
        %1076 = vmatpush1.bf16.xpose.msra.mxu0 0
        %1077 = vmatprep.subr.bf16.mxu0 0
        %1078 = vmatpush1.bf16.xpose.msra.mxu0 %v1061
        %1079 = vmatprep.subr.bf16.mxu0 0
        %1080 = vmatpush2.bf16.xpose.msra.mxu0 0
        %1081 = vmatprep.subr.bf16.mxu0 0
        %1082 = vmatpush2.bf16.xpose.msra.mxu0 0
        %1083 = vmatprep.subr.bf16.mxu0 0
        %1084 = vmatpush2.bf16.xpose.msra.mxu0 0
        %1085 = vmatprep.subr.bf16.mxu0 0
        %1086 = vmatpush2.bf16.xpose.msra.mxu0 0
        %1087 = vmatprep.subr.bf16.mxu0 0
        %1088 = vmatpush2.bf16.xpose.msra.mxu0 0
        %1089 = vmatprep.subr.bf16.mxu0 0
        %1090 = vmatpush2.bf16.xpose.msra.mxu0 0
        %1091 = vmatprep.subr.bf16.mxu0 0
        %1092 = vmatpush2.bf16.xpose.msra.mxu0 0
        %1093 = vmatprep.subr.bf16.mxu0 0
        %1094 = vmatpush2.bf16.xpose.msra.mxu0 0
        %1095 = vmatprep.mubr.bf16.mxu0 0
        %1096 = vmatmul.mubr.bf16.gmra.mxu0 %v1058
        %v1097 = vpop.f32.mrf.mxu0
        %v1098 = vadd.f32 0.0, %v1097
        %v1099 = vpop.f32.mrf.mxu0
        %v1100 = vpop.f32.mrf.mxu0
        %v1101 = vpop.f32.mrf.mxu0
        %1102 = vdwg.mxu0
        %v1103 = vmul.f32 %v1098, 0.088388346
        %v1104 = vsel %vm782, %v1103, -1e+30
        %vm1105 = vcmask 64512
        %v1106 = vsel %vm1105, %v1104, -inf
        %1107 = vmax.xlane.f32.xlu0 %v1106
        %v1108 = vpop.xlane.xlu0 %1107
        %v1109 = vsub.f32 %v1104, %v1108
        %v1110 = vmul.f32 %v1109, 1.442695
        %v1111 = vpow.pop %v1110
        %v1112 = vsel %vm1105, %v1111, 0.0
        %1113 = vadd.xlane.f32.xlu0 %v1112
        %v1114 = vpop.xlane.xlu0 %1113
        %v1115 = vrcp.pop %v1114
        %v1116 = vmul.f32 %v1111, %v1115
        %v1117 = vpack.c.bf16 %v1116, %v1116
        %v1119 = vsel %vm1105, %v1117, 0
        %vm1121 = vcmask 1043456
        %v1123 = vsel %vm1121, %v1055, 0
        %1125 = vmatprep.subr.bf16.mxu0 0
        %1126 = vmatpush1.bf16.msra.mxu0 0
        %1127 = vmatprep.subr.bf16.mxu0 0
        %1128 = vmatpush1.bf16.msra.mxu0 0
        %1129 = vmatprep.subr.bf16.mxu0 0
        %1130 = vmatpush1.bf16.msra.mxu0 0
        %1131 = vmatprep.subr.bf16.mxu0 0
        %1132 = vmatpush1.bf16.msra.mxu0 0
        %1133 = vmatprep.subr.bf16.mxu0 0
        %1134 = vmatpush1.bf16.msra.mxu0 0
        %1135 = vmatprep.subr.bf16.mxu0 0
        %1136 = vmatpush1.bf16.msra.mxu0 0
        %1137 = vmatprep.subr.bf16.mxu0 0
        %1138 = vmatpush1.bf16.msra.mxu0 0
        %1139 = vmatprep.subr.bf16.mxu0 0
        %1140 = vmatpush1.bf16.msra.mxu0 %v1123
        %1141 = vmatprep.subr.bf16.mxu0 0
        %1142 = vmatpush2.bf16.msra.mxu0 0
        %1143 = vmatprep.subr.bf16.mxu0 0
        %1144 = vmatpush2.bf16.msra.mxu0 0
        %1145 = vmatprep.subr.bf16.mxu0 0
        %1146 = vmatpush2.bf16.msra.mxu0 0
        %1147 = vmatprep.subr.bf16.mxu0 0
        %1148 = vmatpush2.bf16.msra.mxu0 0
        %1149 = vmatprep.subr.bf16.mxu0 0
        %1150 = vmatpush2.bf16.msra.mxu0 0
        %1151 = vmatprep.subr.bf16.mxu0 0
        %1152 = vmatpush2.bf16.msra.mxu0 0
        %1153 = vmatprep.subr.bf16.mxu0 0
        %1154 = vmatpush2.bf16.msra.mxu0 0
        %1155 = vmatprep.subr.bf16.mxu0 0
        %1156 = vmatpush2.bf16.msra.mxu0 0
        %1157 = vmatprep.mubr.bf16.mxu0 0
        %1158 = vmatmul.mubr.bf16.gmra.mxu0 %v1119
        %v1159 = vpop.f32.mrf.mxu0
        %v1160 = vadd.f32 0.0, %v1159
        %v1161 = vpop.f32.mrf.mxu0
        %v1162 = vpop.f32.mrf.mxu0
        %v1163 = vpop.f32.mrf.mxu0
        %1164 = vdwg.mxu0
        %v1165 = vpack.c.bf16 %v1160, %v1160
        %v1166 = vld [vmem:[%s645] sm:$0xf]
        %v1167 = vld [vmem:[%s645 + $0x4] sm:$0xf]
        %v1168 = vld [vmem:[%s645 + $0x8] sm:$0xf]
        %v1169 = vld [vmem:[%s645 + $0xc] sm:$0xf]
        %1171 = vrot.lane.b32.xlu0 %v1053, 96
        %v1172 = vpop.permute.xlu0 %1171
        %1174 = vrot.lane.b32.xlu0 %v1054, 96
        %v1175 = vpop.permute.xlu0 %1174
        %v1177 = vsel %vm1056, %v1172, 0
        %v1180 = vsel %vm1056, %v1175, 0
        %1182 = vmatprep.subr.bf16.mxu0 0
        %1183 = vmatpush1.bf16.xpose.msra.mxu0 0
        %1184 = vmatprep.subr.bf16.mxu0 0
        %1185 = vmatpush1.bf16.xpose.msra.mxu0 0
        %1186 = vmatprep.subr.bf16.mxu0 0
        %1187 = vmatpush1.bf16.xpose.msra.mxu0 0
        %1188 = vmatprep.subr.bf16.mxu0 0
        %1189 = vmatpush1.bf16.xpose.msra.mxu0 0
        %1190 = vmatprep.subr.bf16.mxu0 0
        %1191 = vmatpush1.bf16.xpose.msra.mxu0 0
        %1192 = vmatprep.subr.bf16.mxu0 0
        %1193 = vmatpush1.bf16.xpose.msra.mxu0 0
        %1194 = vmatprep.subr.bf16.mxu0 0
        %1195 = vmatpush1.bf16.xpose.msra.mxu0 0
        %1196 = vmatprep.subr.bf16.mxu0 0
        %1197 = vmatpush1.bf16.xpose.msra.mxu0 %v1180
        %1198 = vmatprep.subr.bf16.mxu0 0
        %1199 = vmatpush2.bf16.xpose.msra.mxu0 0
        %1200 = vmatprep.subr.bf16.mxu0 0
        %1201 = vmatpush2.bf16.xpose.msra.mxu0 0
        %1202 = vmatprep.subr.bf16.mxu0 0
        %1203 = vmatpush2.bf16.xpose.msra.mxu0 0
        %1204 = vmatprep.subr.bf16.mxu0 0
        %1205 = vmatpush2.bf16.xpose.msra.mxu0 0
        %1206 = vmatprep.subr.bf16.mxu0 0
        %1207 = vmatpush2.bf16.xpose.msra.mxu0 0
        %1208 = vmatprep.subr.bf16.mxu0 0
        %1209 = vmatpush2.bf16.xpose.msra.mxu0 0
        %1210 = vmatprep.subr.bf16.mxu0 0
        %1211 = vmatpush2.bf16.xpose.msra.mxu0 0
        %1212 = vmatprep.subr.bf16.mxu0 0
        %1213 = vmatpush2.bf16.xpose.msra.mxu0 0
        %1214 = vmatprep.mubr.bf16.mxu0 0
        %1215 = vmatmul.mubr.bf16.gmra.mxu0 %v1177
        %v1216 = vpop.f32.mrf.mxu0
        %v1217 = vadd.f32 0.0, %v1216
        %v1218 = vpop.f32.mrf.mxu0
        %v1219 = vpop.f32.mrf.mxu0
        %v1220 = vpop.f32.mrf.mxu0
        %1221 = vdwg.mxu0
        %v1222 = vmul.f32 %v1217, 0.088388346
        %v1223 = vsel %vm782, %v1222, -1e+30
        %v1224 = vsel %vm1105, %v1223, -inf
        %1225 = vmax.xlane.f32.xlu0 %v1224
        %v1226 = vpop.xlane.xlu0 %1225
        %v1227 = vsub.f32 %v1223, %v1226
        %v1228 = vmul.f32 %v1227, 1.442695
        %v1229 = vpow.pop %v1228
        %v1230 = vsel %vm1105, %v1229, 0.0
        %1231 = vadd.xlane.f32.xlu0 %v1230
        %v1232 = vpop.xlane.xlu0 %1231
        %v1233 = vrcp.pop %v1232
        %v1234 = vmul.f32 %v1229, %v1233
        %v1235 = vpack.c.bf16 %v1234, %v1234
        %1237 = vrot.lane.b32.xlu0 %v1055, 96
        %v1238 = vpop.permute.xlu0 %1237
        %v1240 = vsel %vm1105, %v1235, 0
        %v1243 = vsel %vm1121, %v1238, 0
        %1245 = vmatprep.subr.bf16.mxu0 0
        %1246 = vmatpush1.bf16.msra.mxu0 0
        %1247 = vmatprep.subr.bf16.mxu0 0
        %1248 = vmatpush1.bf16.msra.mxu0 0
        %1249 = vmatprep.subr.bf16.mxu0 0
        %1250 = vmatpush1.bf16.msra.mxu0 0
        %1251 = vmatprep.subr.bf16.mxu0 0
        %1252 = vmatpush1.bf16.msra.mxu0 0
        %1253 = vmatprep.subr.bf16.mxu0 0
        %1254 = vmatpush1.bf16.msra.mxu0 0
        %1255 = vmatprep.subr.bf16.mxu0 0
        %1256 = vmatpush1.bf16.msra.mxu0 0
        %1257 = vmatprep.subr.bf16.mxu0 0
        %1258 = vmatpush1.bf16.msra.mxu0 0
        %1259 = vmatprep.subr.bf16.mxu0 0
        %1260 = vmatpush1.bf16.msra.mxu0 %v1243
        %1261 = vmatprep.subr.bf16.mxu0 0
        %1262 = vmatpush2.bf16.msra.mxu0 0
        %1263 = vmatprep.subr.bf16.mxu0 0
        %1264 = vmatpush2.bf16.msra.mxu0 0
        %1265 = vmatprep.subr.bf16.mxu0 0
        %1266 = vmatpush2.bf16.msra.mxu0 0
        %1267 = vmatprep.subr.bf16.mxu0 0
        %1268 = vmatpush2.bf16.msra.mxu0 0
        %1269 = vmatprep.subr.bf16.mxu0 0
        %1270 = vmatpush2.bf16.msra.mxu0 0
        %1271 = vmatprep.subr.bf16.mxu0 0
        %1272 = vmatpush2.bf16.msra.mxu0 0
        %1273 = vmatprep.subr.bf16.mxu0 0
        %1274 = vmatpush2.bf16.msra.mxu0 0
        %1275 = vmatprep.subr.bf16.mxu0 0
        %1276 = vmatpush2.bf16.msra.mxu0 0
        %1277 = vmatprep.mubr.bf16.mxu0 0
        %1278 = vmatmul.mubr.bf16.gmra.mxu0 %v1240
        %v1279 = vpop.f32.mrf.mxu0
        %v1280 = vadd.f32 0.0, %v1279
        %v1281 = vpop.f32.mrf.mxu0
        %v1282 = vpop.f32.mrf.mxu0
        %v1283 = vpop.f32.mrf.mxu0
        %1284 = vdwg.mxu0
        %v1285 = vpack.c.bf16 %v1280, %v1280
        %v1286 = vld [vmem:[%s645 + $0x10] sm:$0xf]
        %v1287 = vld [vmem:[%s645 + $0x14] sm:$0xf]
        %v1288 = vld [vmem:[%s645 + $0x18] sm:$0xf]
        %v1289 = vld [vmem:[%s645 + $0x1c] sm:$0xf]
        %v1294 = vunpack.c.l.b16 %v1286
        %v1295 = vunpack.c.l.b16 %v1287
        %v1296 = vunpack.c.l.b16 %v1288
        %v1297 = vunpack.c.l.b16 %v1289
        %v1298 = vpack.c.b16 %v1295, %v1294
        %v1299 = vpack.c.b16 %v1297, %v1296
        %v1303 = vsel %vm1056, %v1285, 0
        %1305 = vmatprep.subr.bf16.mxu0 0
        %1306 = vmatpush1.bf16.msra.mxu0 0
        %1307 = vmatprep.subr.bf16.mxu0 0
        %1308 = vmatpush1.bf16.msra.mxu0 0
        %1309 = vmatprep.subr.bf16.mxu0 0
        %1310 = vmatpush1.bf16.msra.mxu0 0
        %1311 = vmatprep.subr.bf16.mxu0 0
        %1312 = vmatpush1.bf16.msra.mxu0 0
        %1313 = vmatprep.subr.bf16.mxu0 0
        %1314 = vmatpush1.bf16.msra.mxu0 0
        %1315 = vmatprep.subr.bf16.mxu0 0
        %1316 = vmatpush1.bf16.msra.mxu0 0
        %1317 = vmatprep.subr.bf16.mxu0 0
        %1318 = vmatpush1.bf16.msra.mxu0 %v1299
        %1319 = vmatprep.subr.bf16.mxu0 0
        %1320 = vmatpush1.bf16.msra.mxu0 %v1298
        %1321 = vmatprep.subr.bf16.mxu0 0
        %1322 = vmatpush2.bf16.msra.mxu0 0
        %1323 = vmatprep.subr.bf16.mxu0 0
        %1324 = vmatpush2.bf16.msra.mxu0 0
        %1325 = vmatprep.subr.bf16.mxu0 0
        %1326 = vmatpush2.bf16.msra.mxu0 0
        %1327 = vmatprep.subr.bf16.mxu0 0
        %1328 = vmatpush2.bf16.msra.mxu0 0
        %1329 = vmatprep.subr.bf16.mxu0 0
        %1330 = vmatpush2.bf16.msra.mxu0 0
        %1331 = vmatprep.subr.bf16.mxu0 0
        %1332 = vmatpush2.bf16.msra.mxu0 0
        %1333 = vmatprep.subr.bf16.mxu0 0
        %1334 = vmatpush2.bf16.msra.mxu0 0
        %1335 = vmatprep.subr.bf16.mxu0 0
        %1336 = vmatpush2.bf16.msra.mxu0 0
        %1337 = vmatprep.mubr.bf16.mxu0 0
        %1338 = vmatmul.mubr.bf16.gmra.mxu0 %v1303
        %v1339 = vpop.f32.mrf.mxu0
        %v1340 = vadd.f32 0.0, %v1339
        %v1341 = vpop.f32.mrf.mxu0
        %v1342 = vpop.f32.mrf.mxu0
        %v1343 = vpop.f32.mrf.mxu0
        %1344 = vdwg.mxu0
        %v1349 = vunpack.c.l.b16 %v1166
        %v1350 = vunpack.c.l.b16 %v1167
        %v1351 = vunpack.c.l.b16 %v1168
        %v1352 = vunpack.c.l.b16 %v1169
        %v1353 = vpack.c.b16 %v1350, %v1349
        %v1354 = vpack.c.b16 %v1352, %v1351
        %v1358 = vsel %vm1056, %v1165, 0
        %1360 = vmatprep.subr.bf16.mxu0 0
        %1361 = vmatpush1.bf16.msra.mxu0 0
        %1362 = vmatprep.subr.bf16.mxu0 0
        %1363 = vmatpush1.bf16.msra.mxu0 0
        %1364 = vmatprep.subr.bf16.mxu0 0
        %1365 = vmatpush1.bf16.msra.mxu0 0
        %1366 = vmatprep.subr.bf16.mxu0 0
        %1367 = vmatpush1.bf16.msra.mxu0 0
        %1368 = vmatprep.subr.bf16.mxu0 0
        %1369 = vmatpush1.bf16.msra.mxu0 0
        %1370 = vmatprep.subr.bf16.mxu0 0
        %1371 = vmatpush1.bf16.msra.mxu0 0
        %1372 = vmatprep.subr.bf16.mxu0 0
        %1373 = vmatpush1.bf16.msra.mxu0 %v1354
        %1374 = vmatprep.subr.bf16.mxu0 0
        %1375 = vmatpush1.bf16.msra.mxu0 %v1353
        %1376 = vmatprep.subr.bf16.mxu0 0
        %1377 = vmatpush2.bf16.msra.mxu0 0
        %1378 = vmatprep.subr.bf16.mxu0 0
        %1379 = vmatpush2.bf16.msra.mxu0 0
        %1380 = vmatprep.subr.bf16.mxu0 0
        %1381 = vmatpush2.bf16.msra.mxu0 0
        %1382 = vmatprep.subr.bf16.mxu0 0
        %1383 = vmatpush2.bf16.msra.mxu0 0
        %1384 = vmatprep.subr.bf16.mxu0 0
        %1385 = vmatpush2.bf16.msra.mxu0 0
        %1386 = vmatprep.subr.bf16.mxu0 0
        %1387 = vmatpush2.bf16.msra.mxu0 0
        %1388 = vmatprep.subr.bf16.mxu0 0
        %1389 = vmatpush2.bf16.msra.mxu0 0
        %1390 = vmatprep.subr.bf16.mxu0 0
        %1391 = vmatpush2.bf16.msra.mxu0 0
        %1392 = vmatprep.mubr.bf16.mxu0 0
        %1393 = vmatmul.mubr.bf16.gmra.mxu0 %v1358
        %v1394 = vpop.f32.mrf.mxu0
        %v1395 = vadd.f32 %v1340, %v1394
        %v1396 = vpop.f32.mrf.mxu0
        %v1397 = vpop.f32.mrf.mxu0
        %v1398 = vpop.f32.mrf.mxu0
        %1399 = vdwg.mxu0
        %1400 = vrot.lane.b32.xlu0 %v1053, 64
        %v1401 = vpop.permute.xlu0 %1400
        %1402 = vrot.lane.b32.xlu0 %v1054, 64
        %v1403 = vpop.permute.xlu0 %1402
        %v1405 = vsel %vm1056, %v1401, 0
        %v1408 = vsel %vm1056, %v1403, 0
        %1410 = vmatprep.subr.bf16.mxu0 0
        %1411 = vmatpush1.bf16.xpose.msra.mxu0 0
        %1412 = vmatprep.subr.bf16.mxu0 0
        %1413 = vmatpush1.bf16.xpose.msra.mxu0 0
        %1414 = vmatprep.subr.bf16.mxu0 0
        %1415 = vmatpush1.bf16.xpose.msra.mxu0 0
        %1416 = vmatprep.subr.bf16.mxu0 0
        %1417 = vmatpush1.bf16.xpose.msra.mxu0 0
        %1418 = vmatprep.subr.bf16.mxu0 0
        %1419 = vmatpush1.bf16.xpose.msra.mxu0 0
        %1420 = vmatprep.subr.bf16.mxu0 0
        %1421 = vmatpush1.bf16.xpose.msra.mxu0 0
        %1422 = vmatprep.subr.bf16.mxu0 0
        %1423 = vmatpush1.bf16.xpose.msra.mxu0 0
        %1424 = vmatprep.subr.bf16.mxu0 0
        %1425 = vmatpush1.bf16.xpose.msra.mxu0 %v1408
        %1426 = vmatprep.subr.bf16.mxu0 0
        %1427 = vmatpush2.bf16.xpose.msra.mxu0 0
        %1428 = vmatprep.subr.bf16.mxu0 0
        %1429 = vmatpush2.bf16.xpose.msra.mxu0 0
        %1430 = vmatprep.subr.bf16.mxu0 0
        %1431 = vmatpush2.bf16.xpose.msra.mxu0 0
        %1432 = vmatprep.subr.bf16.mxu0 0
        %1433 = vmatpush2.bf16.xpose.msra.mxu0 0
        %1434 = vmatprep.subr.bf16.mxu0 0
        %1435 = vmatpush2.bf16.xpose.msra.mxu0 0
        %1436 = vmatprep.subr.bf16.mxu0 0
        %1437 = vmatpush2.bf16.xpose.msra.mxu0 0
        %1438 = vmatprep.subr.bf16.mxu0 0
        %1439 = vmatpush2.bf16.xpose.msra.mxu0 0
        %1440 = vmatprep.subr.bf16.mxu0 0
        %1441 = vmatpush2.bf16.xpose.msra.mxu0 0
        %1442 = vmatprep.mubr.bf16.mxu0 0
        %1443 = vmatmul.mubr.bf16.gmra.mxu0 %v1405
        %v1444 = vpop.f32.mrf.mxu0
        %v1445 = vadd.f32 0.0, %v1444
        %v1446 = vpop.f32.mrf.mxu0
        %v1447 = vpop.f32.mrf.mxu0
        %v1448 = vpop.f32.mrf.mxu0
        %1449 = vdwg.mxu0
        %v1450 = vmul.f32 %v1445, 0.088388346
        %v1451 = vsel %vm782, %v1450, -1e+30
        %v1452 = vsel %vm1105, %v1451, -inf
        %1453 = vmax.xlane.f32.xlu0 %v1452
        %v1454 = vpop.xlane.xlu0 %1453
        %v1455 = vsub.f32 %v1451, %v1454
        %v1456 = vmul.f32 %v1455, 1.442695
        %v1457 = vpow.pop %v1456
        %v1458 = vsel %vm1105, %v1457, 0.0
        %1459 = vadd.xlane.f32.xlu0 %v1458
        %v1460 = vpop.xlane.xlu0 %1459
        %v1461 = vrcp.pop %v1460
        %v1462 = vmul.f32 %v1457, %v1461
        %v1463 = vpack.c.bf16 %v1462, %v1462
        %1464 = vrot.lane.b32.xlu0 %v1055, 64
        %v1465 = vpop.permute.xlu0 %1464
        %v1467 = vsel %vm1105, %v1463, 0
        %v1470 = vsel %vm1121, %v1465, 0
        %1472 = vmatprep.subr.bf16.mxu0 0
        %1473 = vmatpush1.bf16.msra.mxu0 0
        %1474 = vmatprep.subr.bf16.mxu0 0
        %1475 = vmatpush1.bf16.msra.mxu0 0
        %1476 = vmatprep.subr.bf16.mxu0 0
        %1477 = vmatpush1.bf16.msra.mxu0 0
        %1478 = vmatprep.subr.bf16.mxu0 0
        %1479 = vmatpush1.bf16.msra.mxu0 0
        %1480 = vmatprep.subr.bf16.mxu0 0
        %1481 = vmatpush1.bf16.msra.mxu0 0
        %1482 = vmatprep.subr.bf16.mxu0 0
        %1483 = vmatpush1.bf16.msra.mxu0 0
        %1484 = vmatprep.subr.bf16.mxu0 0
        %1485 = vmatpush1.bf16.msra.mxu0 0
        %1486 = vmatprep.subr.bf16.mxu0 0
        %1487 = vmatpush1.bf16.msra.mxu0 %v1470
        %1488 = vmatprep.subr.bf16.mxu0 0
        %1489 = vmatpush2.bf16.msra.mxu0 0
        %1490 = vmatprep.subr.bf16.mxu0 0
        %1491 = vmatpush2.bf16.msra.mxu0 0
        %1492 = vmatprep.subr.bf16.mxu0 0
        %1493 = vmatpush2.bf16.msra.mxu0 0
        %1494 = vmatprep.subr.bf16.mxu0 0
        %1495 = vmatpush2.bf16.msra.mxu0 0
        %1496 = vmatprep.subr.bf16.mxu0 0
        %1497 = vmatpush2.bf16.msra.mxu0 0
        %1498 = vmatprep.subr.bf16.mxu0 0
        %1499 = vmatpush2.bf16.msra.mxu0 0
        %1500 = vmatprep.subr.bf16.mxu0 0
        %1501 = vmatpush2.bf16.msra.mxu0 0
        %1502 = vmatprep.subr.bf16.mxu0 0
        %1503 = vmatpush2.bf16.msra.mxu0 0
        %1504 = vmatprep.mubr.bf16.mxu0 0
        %1505 = vmatmul.mubr.bf16.gmra.mxu0 %v1467
        %v1506 = vpop.f32.mrf.mxu0
        %v1507 = vadd.f32 0.0, %v1506
        %v1508 = vpop.f32.mrf.mxu0
        %v1509 = vpop.f32.mrf.mxu0
        %v1510 = vpop.f32.mrf.mxu0
        %1511 = vdwg.mxu0
        %v1512 = vpack.c.bf16 %v1507, %v1507
        %v1513 = vld [vmem:[%s645 + $0x20] sm:$0xf]
        %v1514 = vld [vmem:[%s645 + $0x24] sm:$0xf]
        %v1515 = vld [vmem:[%s645 + $0x28] sm:$0xf]
        %v1516 = vld [vmem:[%s645 + $0x2c] sm:$0xf]
        %v1521 = vunpack.c.l.b16 %v1513
        %v1522 = vunpack.c.l.b16 %v1514
        %v1523 = vunpack.c.l.b16 %v1515
        %v1524 = vunpack.c.l.b16 %v1516
        %v1525 = vpack.c.b16 %v1522, %v1521
        %v1526 = vpack.c.b16 %v1524, %v1523
        %v1530 = vsel %vm1056, %v1512, 0
        %1532 = vmatprep.subr.bf16.mxu0 0
        %1533 = vmatpush1.bf16.msra.mxu0 0
        %1534 = vmatprep.subr.bf16.mxu0 0
        %1535 = vmatpush1.bf16.msra.mxu0 0
        %1536 = vmatprep.subr.bf16.mxu0 0
        %1537 = vmatpush1.bf16.msra.mxu0 0
        %1538 = vmatprep.subr.bf16.mxu0 0
        %1539 = vmatpush1.bf16.msra.mxu0 0
        %1540 = vmatprep.subr.bf16.mxu0 0
        %1541 = vmatpush1.bf16.msra.mxu0 0
        %1542 = vmatprep.subr.bf16.mxu0 0
        %1543 = vmatpush1.bf16.msra.mxu0 0
        %1544 = vmatprep.subr.bf16.mxu0 0
        %1545 = vmatpush1.bf16.msra.mxu0 %v1526
        %1546 = vmatprep.subr.bf16.mxu0 0
        %1547 = vmatpush1.bf16.msra.mxu0 %v1525
        %1548 = vmatprep.subr.bf16.mxu0 0
        %1549 = vmatpush2.bf16.msra.mxu0 0
        %1550 = vmatprep.subr.bf16.mxu0 0
        %1551 = vmatpush2.bf16.msra.mxu0 0
        %1552 = vmatprep.subr.bf16.mxu0 0
        %1553 = vmatpush2.bf16.msra.mxu0 0
        %1554 = vmatprep.subr.bf16.mxu0 0
        %1555 = vmatpush2.bf16.msra.mxu0 0
        %1556 = vmatprep.subr.bf16.mxu0 0
        %1557 = vmatpush2.bf16.msra.mxu0 0
        %1558 = vmatprep.subr.bf16.mxu0 0
        %1559 = vmatpush2.bf16.msra.mxu0 0
        %1560 = vmatprep.subr.bf16.mxu0 0
        %1561 = vmatpush2.bf16.msra.mxu0 0
        %1562 = vmatprep.subr.bf16.mxu0 0
        %1563 = vmatpush2.bf16.msra.mxu0 0
        %1564 = vmatprep.mubr.bf16.mxu0 0
        %1565 = vmatmul.mubr.bf16.gmra.mxu0 %v1530
        %v1566 = vpop.f32.mrf.mxu0
        %v1567 = vadd.f32 0.0, %v1566
        %v1568 = vpop.f32.mrf.mxu0
        %v1569 = vpop.f32.mrf.mxu0
        %v1570 = vpop.f32.mrf.mxu0
        %1571 = vdwg.mxu0
        %v1572 = vadd.f32 %v1395, %v1567
        %1573 = vrot.lane.b32.xlu0 %v1053, 32
        %v1574 = vpop.permute.xlu0 %1573
        %1575 = vrot.lane.b32.xlu0 %v1054, 32
        %v1576 = vpop.permute.xlu0 %1575
        %v1578 = vsel %vm1056, %v1574, 0
        %v1581 = vsel %vm1056, %v1576, 0
        %1583 = vmatprep.subr.bf16.mxu0 0
        %1584 = vmatpush1.bf16.xpose.msra.mxu0 0
        %1585 = vmatprep.subr.bf16.mxu0 0
        %1586 = vmatpush1.bf16.xpose.msra.mxu0 0
        %1587 = vmatprep.subr.bf16.mxu0 0
        %1588 = vmatpush1.bf16.xpose.msra.mxu0 0
        %1589 = vmatprep.subr.bf16.mxu0 0
        %1590 = vmatpush1.bf16.xpose.msra.mxu0 0
        %1591 = vmatprep.subr.bf16.mxu0 0
        %1592 = vmatpush1.bf16.xpose.msra.mxu0 0
        %1593 = vmatprep.subr.bf16.mxu0 0
        %1594 = vmatpush1.bf16.xpose.msra.mxu0 0
        %1595 = vmatprep.subr.bf16.mxu0 0
        %1596 = vmatpush1.bf16.xpose.msra.mxu0 0
        %1597 = vmatprep.subr.bf16.mxu0 0
        %1598 = vmatpush1.bf16.xpose.msra.mxu0 %v1581
        %1599 = vmatprep.subr.bf16.mxu0 0
        %1600 = vmatpush2.bf16.xpose.msra.mxu0 0
        %1601 = vmatprep.subr.bf16.mxu0 0
        %1602 = vmatpush2.bf16.xpose.msra.mxu0 0
        %1603 = vmatprep.subr.bf16.mxu0 0
        %1604 = vmatpush2.bf16.xpose.msra.mxu0 0
        %1605 = vmatprep.subr.bf16.mxu0 0
        %1606 = vmatpush2.bf16.xpose.msra.mxu0 0
        %1607 = vmatprep.subr.bf16.mxu0 0
        %1608 = vmatpush2.bf16.xpose.msra.mxu0 0
        %1609 = vmatprep.subr.bf16.mxu0 0
        %1610 = vmatpush2.bf16.xpose.msra.mxu0 0
        %1611 = vmatprep.subr.bf16.mxu0 0
        %1612 = vmatpush2.bf16.xpose.msra.mxu0 0
        %1613 = vmatprep.subr.bf16.mxu0 0
        %1614 = vmatpush2.bf16.xpose.msra.mxu0 0
        %1615 = vmatprep.mubr.bf16.mxu0 0
        %1616 = vmatmul.mubr.bf16.gmra.mxu0 %v1578
        %v1617 = vpop.f32.mrf.mxu0
        %v1618 = vadd.f32 0.0, %v1617
        %v1619 = vpop.f32.mrf.mxu0
        %v1620 = vpop.f32.mrf.mxu0
        %v1621 = vpop.f32.mrf.mxu0
        %1622 = vdwg.mxu0
        %v1623 = vmul.f32 %v1618, 0.088388346
        %v1624 = vsel %vm782, %v1623, -1e+30
        %v1625 = vsel %vm1105, %v1624, -inf
        %1626 = vmax.xlane.f32.xlu0 %v1625
        %v1627 = vpop.xlane.xlu0 %1626
        %v1628 = vsub.f32 %v1624, %v1627
        %v1629 = vmul.f32 %v1628, 1.442695
        %v1630 = vpow.pop %v1629
        %v1631 = vsel %vm1105, %v1630, 0.0
        %1632 = vadd.xlane.f32.xlu0 %v1631
        %v1633 = vpop.xlane.xlu0 %1632
        %v1634 = vrcp.pop %v1633
        %v1635 = vmul.f32 %v1630, %v1634
        %v1636 = vpack.c.bf16 %v1635, %v1635
        %1637 = vrot.lane.b32.xlu0 %v1055, 32
        %v1638 = vpop.permute.xlu0 %1637
        %v1640 = vsel %vm1105, %v1636, 0
        %v1643 = vsel %vm1121, %v1638, 0
        %1645 = vmatprep.subr.bf16.mxu0 0
        %1646 = vmatpush1.bf16.msra.mxu0 0
        %1647 = vmatprep.subr.bf16.mxu0 0
        %1648 = vmatpush1.bf16.msra.mxu0 0
        %1649 = vmatprep.subr.bf16.mxu0 0
        %1650 = vmatpush1.bf16.msra.mxu0 0
        %1651 = vmatprep.subr.bf16.mxu0 0
        %1652 = vmatpush1.bf16.msra.mxu0 0
        %1653 = vmatprep.subr.bf16.mxu0 0
        %1654 = vmatpush1.bf16.msra.mxu0 0
        %1655 = vmatprep.subr.bf16.mxu0 0
        %1656 = vmatpush1.bf16.msra.mxu0 0
        %1657 = vmatprep.subr.bf16.mxu0 0
        %1658 = vmatpush1.bf16.msra.mxu0 0
        %1659 = vmatprep.subr.bf16.mxu0 0
        %1660 = vmatpush1.bf16.msra.mxu0 %v1643
        %1661 = vmatprep.subr.bf16.mxu0 0
        %1662 = vmatpush2.bf16.msra.mxu0 0
        %1663 = vmatprep.subr.bf16.mxu0 0
        %1664 = vmatpush2.bf16.msra.mxu0 0
        %1665 = vmatprep.subr.bf16.mxu0 0
        %1666 = vmatpush2.bf16.msra.mxu0 0
        %1667 = vmatprep.subr.bf16.mxu0 0
        %1668 = vmatpush2.bf16.msra.mxu0 0
        %1669 = vmatprep.subr.bf16.mxu0 0
        %1670 = vmatpush2.bf16.msra.mxu0 0
        %1671 = vmatprep.subr.bf16.mxu0 0
        %1672 = vmatpush2.bf16.msra.mxu0 0
        %1673 = vmatprep.subr.bf16.mxu0 0
        %1674 = vmatpush2.bf16.msra.mxu0 0
        %1675 = vmatprep.subr.bf16.mxu0 0
        %1676 = vmatpush2.bf16.msra.mxu0 0
        %1677 = vmatprep.mubr.bf16.mxu0 0
        %1678 = vmatmul.mubr.bf16.gmra.mxu0 %v1640
        %v1679 = vpop.f32.mrf.mxu0
        %v1680 = vadd.f32 0.0, %v1679
        %v1681 = vpop.f32.mrf.mxu0
        %v1682 = vpop.f32.mrf.mxu0
        %v1683 = vpop.f32.mrf.mxu0
        %1684 = vdwg.mxu0
        %v1685 = vpack.c.bf16 %v1680, %v1680
        %v1686 = vld [vmem:[%s645 + $0x30] sm:$0xf]
        %v1687 = vld [vmem:[%s645 + $0x34] sm:$0xf]
        %v1688 = vld [vmem:[%s645 + $0x38] sm:$0xf]
        %v1689 = vld [vmem:[%s645 + $0x3c] sm:$0xf]
        %v1694 = vunpack.c.l.b16 %v1686
        %v1695 = vunpack.c.l.b16 %v1687
        %v1696 = vunpack.c.l.b16 %v1688
        %v1697 = vunpack.c.l.b16 %v1689
        %v1698 = vpack.c.b16 %v1695, %v1694
        %v1699 = vpack.c.b16 %v1697, %v1696
        %v1703 = vsel %vm1056, %v1685, 0
        %1705 = vmatprep.subr.bf16.mxu0 0
        %1706 = vmatpush1.bf16.msra.mxu0 0
        %1707 = vmatprep.subr.bf16.mxu0 0
        %1708 = vmatpush1.bf16.msra.mxu0 0
        %1709 = vmatprep.subr.bf16.mxu0 0
        %1710 = vmatpush1.bf16.msra.mxu0 0
        %1711 = vmatprep.subr.bf16.mxu0 0
        %1712 = vmatpush1.bf16.msra.mxu0 0
        %1713 = vmatprep.subr.bf16.mxu0 0
        %1714 = vmatpush1.bf16.msra.mxu0 0
        %1715 = vmatprep.subr.bf16.mxu0 0
        %1716 = vmatpush1.bf16.msra.mxu0 0
        %1717 = vmatprep.subr.bf16.mxu0 0
        %1718 = vmatpush1.bf16.msra.mxu0 %v1699
        %1719 = vmatprep.subr.bf16.mxu0 0
        %1720 = vmatpush1.bf16.msra.mxu0 %v1698
        %1721 = vmatprep.subr.bf16.mxu0 0
        %1722 = vmatpush2.bf16.msra.mxu0 0
        %1723 = vmatprep.subr.bf16.mxu0 0
        %1724 = vmatpush2.bf16.msra.mxu0 0
        %1725 = vmatprep.subr.bf16.mxu0 0
        %1726 = vmatpush2.bf16.msra.mxu0 0
        %1727 = vmatprep.subr.bf16.mxu0 0
        %1728 = vmatpush2.bf16.msra.mxu0 0
        %1729 = vmatprep.subr.bf16.mxu0 0
        %1730 = vmatpush2.bf16.msra.mxu0 0
        %1731 = vmatprep.subr.bf16.mxu0 0
        %1732 = vmatpush2.bf16.msra.mxu0 0
        %1733 = vmatprep.subr.bf16.mxu0 0
        %1734 = vmatpush2.bf16.msra.mxu0 0
        %1735 = vmatprep.subr.bf16.mxu0 0
        %1736 = vmatpush2.bf16.msra.mxu0 0
        %1737 = vmatprep.mubr.bf16.mxu0 0
        %1738 = vmatmul.mubr.bf16.gmra.mxu0 %v1703
        %v1739 = vpop.f32.mrf.mxu0
        %v1740 = vadd.f32 0.0, %v1739
        %v1741 = vpop.f32.mrf.mxu0
        %v1742 = vpop.f32.mrf.mxu0
        %v1743 = vpop.f32.mrf.mxu0
        %1744 = vdwg.mxu0
        %v1745 = vadd.f32 %v1572, %v1740
        %v1746 = vadd.f32 %v777, %v1745
        %v1747 = vld [vmem:[%s756] sm:$0x1]
        %v1749 = vlaneseq
        %v1750 = vshrl.u32 %v1749, 7
        %v1751 = vsub.s32 0, %v1750
        %v1752 = vrot.slane %v1747, %v1751
        %v1754 = vadd.f32 %v1746, %v1752
        %v1755 = vld [vmem:[%s759] sm:$0x1]
        %v1756 = vld [vmem:[%s762] sm:$0x1]
        %1757 = vadd.xlane.f32.xlu0 %v1754
        %v1758 = vpop.xlane.xlu0 %1757
        %v1759 = vmul.f32 %v1758, %v787
        %v1760 = vsub.f32 %v1754, %v1759
        %v1761 = vmul.f32 %v1760, %v1760
        %1762 = vadd.xlane.f32.xlu0 %v1761
        %v1763 = vpop.xlane.xlu0 %1762
        %v1764 = vmul.f32 %v1763, %v787
        %v1765 = vadd.f32 %v1764, 1e-05
        %v1766 = vrsqrt.pop %v1765
        %v1767 = vmul.f32 %v1760, %v1766
        %v1769 = vlaneseq
        %v1770 = vshrl.u32 %v1769, 7
        %v1771 = vsub.s32 0, %v1770
        %v1772 = vrot.slane %v1755, %v1771
        %v1774 = vmul.f32 %v1767, %v1772
        %v1776 = vlaneseq
        %v1777 = vshrl.u32 %v1776, 7
        %v1778 = vsub.s32 0, %v1777
        %v1779 = vrot.slane %v1756, %v1778
        %v1781 = vadd.f32 %v1774, %v1779
        %v1782 = vpack.c.bf16 %v1781, %v1781
        %v1783 = vld [vmem:[%s654] sm:$0xff]
        %v1784 = vld [vmem:[%s654 + $0x8] sm:$0xff]
        %v1785 = vld [vmem:[%s654 + $0x10] sm:$0xff]
        %v1786 = vld [vmem:[%s654 + $0x18] sm:$0xff]
        %v1787 = vld [vmem:[%s654 + $0x20] sm:$0xff]
        %v1788 = vld [vmem:[%s654 + $0x28] sm:$0xff]
        %v1789 = vld [vmem:[%s654 + $0x30] sm:$0xff]
        %v1790 = vld [vmem:[%s654 + $0x38] sm:$0xff]
        %v1791 = vld [vmem:[%s654 + $0x40] sm:$0xff]
        %v1792 = vld [vmem:[%s654 + $0x48] sm:$0xff]
        %v1793 = vld [vmem:[%s654 + $0x50] sm:$0xff]
        %v1794 = vld [vmem:[%s654 + $0x58] sm:$0xff]
        %v1795 = vld [vmem:[%s654 + $0x60] sm:$0xff]
        %v1796 = vld [vmem:[%s654 + $0x68] sm:$0xff]
        %v1797 = vld [vmem:[%s654 + $0x70] sm:$0xff]
        %v1798 = vld [vmem:[%s654 + $0x78] sm:$0xff]
        %v1799 = vld [vmem:[%s654 + $0x80] sm:$0xff]
        %v1800 = vld [vmem:[%s654 + $0x88] sm:$0xff]
        %v1801 = vld [vmem:[%s654 + $0x90] sm:$0xff]
        %v1802 = vld [vmem:[%s654 + $0x98] sm:$0xff]
        %v1803 = vld [vmem:[%s654 + $0xa0] sm:$0xff]
        %v1804 = vld [vmem:[%s654 + $0xa8] sm:$0xff]
        %v1805 = vld [vmem:[%s654 + $0xb0] sm:$0xff]
        %v1806 = vld [vmem:[%s654 + $0xb8] sm:$0xff]
        %v1807 = vld [vmem:[%s654 + $0xc0] sm:$0xff]
        %v1808 = vld [vmem:[%s654 + $0xc8] sm:$0xff]
        %v1809 = vld [vmem:[%s654 + $0xd0] sm:$0xff]
        %v1810 = vld [vmem:[%s654 + $0xd8] sm:$0xff]
        %v1811 = vld [vmem:[%s654 + $0xe0] sm:$0xff]
        %v1812 = vld [vmem:[%s654 + $0xe8] sm:$0xff]
        %v1813 = vld [vmem:[%s654 + $0xf0] sm:$0xff]
        %v1814 = vld [vmem:[%s654 + $0xf8] sm:$0xff]
        %v1815 = vld [vmem:[%s766] sm:$0xf]
        %v1817 = vlaneseq
        %v1818 = vshrl.u32 %v1817, 7
        %v1819 = vsub.s32 0, %v1818
        %v1820 = vrot.slane %v1815, %v1819
        %v1821 = vlaneseq
        %v1822 = vshrl.u32 %v1821, 7
        %v1823 = vsub.s32 1, %v1822
        %v1824 = vrot.slane %v1815, %v1823
        %v1825 = vlaneseq
        %v1826 = vshrl.u32 %v1825, 7
        %v1827 = vsub.s32 2, %v1826
        %v1828 = vrot.slane %v1815, %v1827
        %v1829 = vlaneseq
        %v1830 = vshrl.u32 %v1829, 7
        %v1831 = vsub.s32 3, %v1830
        %v1832 = vrot.slane %v1815, %v1831
        %v1869 = vunpack.c.l.b16 %v1783
        %v1870 = vunpack.c.h.b16 %v1783
        %v1871 = vunpack.c.l.b16 %v1784
        %v1872 = vunpack.c.h.b16 %v1784
        %v1873 = vunpack.c.l.b16 %v1785
        %v1874 = vunpack.c.h.b16 %v1785
        %v1875 = vunpack.c.l.b16 %v1786
        %v1876 = vunpack.c.h.b16 %v1786
        %v1877 = vunpack.c.l.b16 %v1787
        %v1878 = vunpack.c.h.b16 %v1787
        %v1879 = vunpack.c.l.b16 %v1788
        %v1880 = vunpack.c.h.b16 %v1788
        %v1881 = vunpack.c.l.b16 %v1789
        %v1882 = vunpack.c.h.b16 %v1789
        %v1883 = vunpack.c.l.b16 %v1790
        %v1884 = vunpack.c.h.b16 %v1790
        %v1885 = vunpack.c.l.b16 %v1791
        %v1886 = vunpack.c.h.b16 %v1791
        %v1887 = vunpack.c.l.b16 %v1792
        %v1888 = vunpack.c.h.b16 %v1792
        %v1889 = vunpack.c.l.b16 %v1793
        %v1890 = vunpack.c.h.b16 %v1793
        %v1891 = vunpack.c.l.b16 %v1794
        %v1892 = vunpack.c.h.b16 %v1794
        %v1893 = vunpack.c.l.b16 %v1795
        %v1894 = vunpack.c.h.b16 %v1795
        %v1895 = vunpack.c.l.b16 %v1796
        %v1896 = vunpack.c.h.b16 %v1796
        %v1897 = vunpack.c.l.b16 %v1797
        %v1898 = vunpack.c.h.b16 %v1797
        %v1899 = vunpack.c.l.b16 %v1798
        %v1900 = vunpack.c.h.b16 %v1798
        %v1901 = vunpack.c.l.b16 %v1799
        %v1902 = vunpack.c.h.b16 %v1799
        %v1903 = vunpack.c.l.b16 %v1800
        %v1904 = vunpack.c.h.b16 %v1800
        %v1905 = vunpack.c.l.b16 %v1801
        %v1906 = vunpack.c.h.b16 %v1801
        %v1907 = vunpack.c.l.b16 %v1802
        %v1908 = vunpack.c.h.b16 %v1802
        %v1909 = vunpack.c.l.b16 %v1803
        %v1910 = vunpack.c.h.b16 %v1803
        %v1911 = vunpack.c.l.b16 %v1804
        %v1912 = vunpack.c.h.b16 %v1804
        %v1913 = vunpack.c.l.b16 %v1805
        %v1914 = vunpack.c.h.b16 %v1805
        %v1915 = vunpack.c.l.b16 %v1806
        %v1916 = vunpack.c.h.b16 %v1806
        %v1917 = vunpack.c.l.b16 %v1807
        %v1918 = vunpack.c.h.b16 %v1807
        %v1919 = vunpack.c.l.b16 %v1808
        %v1920 = vunpack.c.h.b16 %v1808
        %v1921 = vunpack.c.l.b16 %v1809
        %v1922 = vunpack.c.h.b16 %v1809
        %v1923 = vunpack.c.l.b16 %v1810
        %v1924 = vunpack.c.h.b16 %v1810
        %v1925 = vunpack.c.l.b16 %v1811
        %v1926 = vunpack.c.h.b16 %v1811
        %v1927 = vunpack.c.l.b16 %v1812
        %v1928 = vunpack.c.h.b16 %v1812
        %v1929 = vunpack.c.l.b16 %v1813
        %v1930 = vunpack.c.h.b16 %v1813
        %v1931 = vunpack.c.l.b16 %v1814
        %v1932 = vunpack.c.h.b16 %v1814
        %v1933 = vpack.c.b16 %v1873, %v1869
        %v1934 = vpack.c.b16 %v1874, %v1870
        %v1935 = vpack.c.b16 %v1875, %v1871
        %v1936 = vpack.c.b16 %v1876, %v1872
        %v1937 = vpack.c.b16 %v1881, %v1877
        %v1938 = vpack.c.b16 %v1882, %v1878
        %v1939 = vpack.c.b16 %v1883, %v1879
        %v1940 = vpack.c.b16 %v1884, %v1880
        %v1941 = vpack.c.b16 %v1889, %v1885
        %v1942 = vpack.c.b16 %v1890, %v1886
        %v1943 = vpack.c.b16 %v1891, %v1887
        %v1944 = vpack.c.b16 %v1892, %v1888
        %v1945 = vpack.c.b16 %v1897, %v1893
        %v1946 = vpack.c.b16 %v1898, %v1894
        %v1947 = vpack.c.b16 %v1899, %v1895
        %v1948 = vpack.c.b16 %v1900, %v1896
        %v1949 = vpack.c.b16 %v1905, %v1901
        %v1950 = vpack.c.b16 %v1906, %v1902
        %v1951 = vpack.c.b16 %v1907, %v1903
        %v1952 = vpack.c.b16 %v1908, %v1904
        %v1953 = vpack.c.b16 %v1913, %v1909
        %v1954 = vpack.c.b16 %v1914, %v1910
        %v1955 = vpack.c.b16 %v1915, %v1911
        %v1956 = vpack.c.b16 %v1916, %v1912
        %v1957 = vpack.c.b16 %v1921, %v1917
        %v1958 = vpack.c.b16 %v1922, %v1918
        %v1959 = vpack.c.b16 %v1923, %v1919
        %v1960 = vpack.c.b16 %v1924, %v1920
        %v1961 = vpack.c.b16 %v1929, %v1925
        %v1962 = vpack.c.b16 %v1930, %v1926
        %v1963 = vpack.c.b16 %v1931, %v1927
        %v1964 = vpack.c.b16 %v1932, %v1928
        %1997 = vmatprep.subr.bf16.mxu0 %v1962
        %1998 = vmatpush1.bf16.msra.mxu0 %v1961
        %1999 = vmatprep.subr.bf16.mxu0 %v1958
        %2000 = vmatpush1.bf16.msra.mxu0 %v1957
        %2001 = vmatprep.subr.bf16.mxu0 %v1954
        %2002 = vmatpush1.bf16.msra.mxu0 %v1953
        %2003 = vmatprep.subr.bf16.mxu0 %v1950
        %2004 = vmatpush1.bf16.msra.mxu0 %v1949
        %2005 = vmatprep.subr.bf16.mxu0 %v1946
        %2006 = vmatpush1.bf16.msra.mxu0 %v1945
        %2007 = vmatprep.subr.bf16.mxu0 %v1942
        %2008 = vmatpush1.bf16.msra.mxu0 %v1941
        %2009 = vmatprep.subr.bf16.mxu0 %v1938
        %2010 = vmatpush1.bf16.msra.mxu0 %v1937
        %2011 = vmatprep.subr.bf16.mxu0 %v1934
        %2012 = vmatpush1.bf16.msra.mxu0 %v1933
        %2013 = vmatprep.subr.bf16.mxu0 0
        %2014 = vmatpush2.bf16.msra.mxu0 0
        %2015 = vmatprep.subr.bf16.mxu0 0
        %2016 = vmatpush2.bf16.msra.mxu0 0
        %2017 = vmatprep.subr.bf16.mxu0 0
        %2018 = vmatpush2.bf16.msra.mxu0 0
        %2019 = vmatprep.subr.bf16.mxu0 0
        %2020 = vmatpush2.bf16.msra.mxu0 0
        %2021 = vmatprep.subr.bf16.mxu0 0
        %2022 = vmatpush2.bf16.msra.mxu0 0
        %2023 = vmatprep.subr.bf16.mxu0 0
        %2024 = vmatpush2.bf16.msra.mxu0 0
        %2025 = vmatprep.subr.bf16.mxu0 0
        %2026 = vmatpush2.bf16.msra.mxu0 0
        %2027 = vmatprep.subr.bf16.mxu0 0
        %2028 = vmatpush2.bf16.msra.mxu0 0
        %2029 = vmatprep.mubr.bf16.mxu0 0
        %2030 = vmatmul.mubr.bf16.gmra.mxu0 %v1782
        %v2031 = vpop.f32.mrf.mxu0
        %v2032 = vadd.f32 %v1820, %v2031
        %v2033 = vpop.f32.mrf.mxu0
        %v2034 = vadd.f32 %v1824, %v2033
        %v2035 = vpop.f32.mrf.mxu0
        %v2036 = vpop.f32.mrf.mxu0
        %2037 = vdwg.mxu0
        %2038 = vmatprep.subr.bf16.mxu0 %v1964
        %2039 = vmatpush1.bf16.msra.mxu0 %v1963
        %2040 = vmatprep.subr.bf16.mxu0 %v1960
        %2041 = vmatpush1.bf16.msra.mxu0 %v1959
        %2042 = vmatprep.subr.bf16.mxu0 %v1956
        %2043 = vmatpush1.bf16.msra.mxu0 %v1955
        %2044 = vmatprep.subr.bf16.mxu0 %v1952
        %2045 = vmatpush1.bf16.msra.mxu0 %v1951
        %2046 = vmatprep.subr.bf16.mxu0 %v1948
        %2047 = vmatpush1.bf16.msra.mxu0 %v1947
        %2048 = vmatprep.subr.bf16.mxu0 %v1944
        %2049 = vmatpush1.bf16.msra.mxu0 %v1943
        %2050 = vmatprep.subr.bf16.mxu0 %v1940
        %2051 = vmatpush1.bf16.msra.mxu0 %v1939
        %2052 = vmatprep.subr.bf16.mxu0 %v1936
        %2053 = vmatpush1.bf16.msra.mxu0 %v1935
        %2054 = vmatprep.subr.bf16.mxu0 0
        %2055 = vmatpush2.bf16.msra.mxu0 0
        %2056 = vmatprep.subr.bf16.mxu0 0
        %2057 = vmatpush2.bf16.msra.mxu0 0
        %2058 = vmatprep.subr.bf16.mxu0 0
        %2059 = vmatpush2.bf16.msra.mxu0 0
        %2060 = vmatprep.subr.bf16.mxu0 0
        %2061 = vmatpush2.bf16.msra.mxu0 0
        %2062 = vmatprep.subr.bf16.mxu0 0
        %2063 = vmatpush2.bf16.msra.mxu0 0
        %2064 = vmatprep.subr.bf16.mxu0 0
        %2065 = vmatpush2.bf16.msra.mxu0 0
        %2066 = vmatprep.subr.bf16.mxu0 0
        %2067 = vmatpush2.bf16.msra.mxu0 0
        %2068 = vmatprep.subr.bf16.mxu0 0
        %2069 = vmatpush2.bf16.msra.mxu0 0
        %2070 = vmatprep.mubr.bf16.mxu0 0
        %2071 = vmatmul.mubr.bf16.gmra.mxu0 %v1782
        %v2072 = vpop.f32.mrf.mxu0
        %v2073 = vadd.f32 %v1828, %v2072
        %v2074 = vpop.f32.mrf.mxu0
        %v2075 = vadd.f32 %v1832, %v2074
        %v2076 = vpop.f32.mrf.mxu0
        %v2077 = vpop.f32.mrf.mxu0
        %2078 = vdwg.mxu0
        %v2079 = vmax.f32 %v2032, 0.0
        %v2080 = vmax.f32 %v2034, 0.0
        %v2081 = vmax.f32 %v2073, 0.0
        %v2082 = vmax.f32 %v2075, 0.0
        %v2083 = vpack.c.bf16 %v2079, %v2079
        %v2084 = vpack.c.bf16 %v2080, %v2080
        %v2085 = vpack.c.bf16 %v2081, %v2081
        %v2086 = vpack.c.bf16 %v2082, %v2082
        %v2087 = vld [vmem:[%s663] sm:$0xf]
        %v2088 = vld [vmem:[%s663 + $0x4] sm:$0xf]
        %v2089 = vld [vmem:[%s663 + $0x8] sm:$0xf]
        %v2090 = vld [vmem:[%s663 + $0xc] sm:$0xf]
        %v2091 = vld [vmem:[%s663 + $0x10] sm:$0xf]
        %v2092 = vld [vmem:[%s663 + $0x14] sm:$0xf]
        %v2093 = vld [vmem:[%s663 + $0x18] sm:$0xf]
        %v2094 = vld [vmem:[%s663 + $0x1c] sm:$0xf]
        %v2095 = vld [vmem:[%s663 + $0x20] sm:$0xf]
        %v2096 = vld [vmem:[%s663 + $0x24] sm:$0xf]
        %v2097 = vld [vmem:[%s663 + $0x28] sm:$0xf]
        %v2098 = vld [vmem:[%s663 + $0x2c] sm:$0xf]
        %v2099 = vld [vmem:[%s663 + $0x30] sm:$0xf]
        %v2100 = vld [vmem:[%s663 + $0x34] sm:$0xf]
        %v2101 = vld [vmem:[%s663 + $0x38] sm:$0xf]
        %v2102 = vld [vmem:[%s663 + $0x3c] sm:$0xf]
        %v2103 = vld [vmem:[%s663 + $0x40] sm:$0xf]
        %v2104 = vld [vmem:[%s663 + $0x44] sm:$0xf]
        %v2105 = vld [vmem:[%s663 + $0x48] sm:$0xf]
        %v2106 = vld [vmem:[%s663 + $0x4c] sm:$0xf]
        %v2107 = vld [vmem:[%s663 + $0x50] sm:$0xf]
        %v2108 = vld [vmem:[%s663 + $0x54] sm:$0xf]
        %v2109 = vld [vmem:[%s663 + $0x58] sm:$0xf]
        %v2110 = vld [vmem:[%s663 + $0x5c] sm:$0xf]
        %v2111 = vld [vmem:[%s663 + $0x60] sm:$0xf]
        %v2112 = vld [vmem:[%s663 + $0x64] sm:$0xf]
        %v2113 = vld [vmem:[%s663 + $0x68] sm:$0xf]
        %v2114 = vld [vmem:[%s663 + $0x6c] sm:$0xf]
        %v2115 = vld [vmem:[%s663 + $0x70] sm:$0xf]
        %v2116 = vld [vmem:[%s663 + $0x74] sm:$0xf]
        %v2117 = vld [vmem:[%s663 + $0x78] sm:$0xf]
        %v2118 = vld [vmem:[%s663 + $0x7c] sm:$0xf]
        %v2119 = vld [vmem:[%s663 + $0x80] sm:$0xf]
        %v2120 = vld [vmem:[%s663 + $0x84] sm:$0xf]
        %v2121 = vld [vmem:[%s663 + $0x88] sm:$0xf]
        %v2122 = vld [vmem:[%s663 + $0x8c] sm:$0xf]
        %v2123 = vld [vmem:[%s663 + $0x90] sm:$0xf]
        %v2124 = vld [vmem:[%s663 + $0x94] sm:$0xf]
        %v2125 = vld [vmem:[%s663 + $0x98] sm:$0xf]
        %v2126 = vld [vmem:[%s663 + $0x9c] sm:$0xf]
        %v2127 = vld [vmem:[%s663 + $0xa0] sm:$0xf]
        %v2128 = vld [vmem:[%s663 + $0xa4] sm:$0xf]
        %v2129 = vld [vmem:[%s663 + $0xa8] sm:$0xf]
        %v2130 = vld [vmem:[%s663 + $0xac] sm:$0xf]
        %v2131 = vld [vmem:[%s663 + $0xb0] sm:$0xf]
        %v2132 = vld [vmem:[%s663 + $0xb4] sm:$0xf]
        %v2133 = vld [vmem:[%s663 + $0xb8] sm:$0xf]
        %v2134 = vld [vmem:[%s663 + $0xbc] sm:$0xf]
        %v2135 = vld [vmem:[%s663 + $0xc0] sm:$0xf]
        %v2136 = vld [vmem:[%s663 + $0xc4] sm:$0xf]
        %v2137 = vld [vmem:[%s663 + $0xc8] sm:$0xf]
        %v2138 = vld [vmem:[%s663 + $0xcc] sm:$0xf]
        %v2139 = vld [vmem:[%s663 + $0xd0] sm:$0xf]
        %v2140 = vld [vmem:[%s663 + $0xd4] sm:$0xf]
        %v2141 = vld [vmem:[%s663 + $0xd8] sm:$0xf]
        %v2142 = vld [vmem:[%s663 + $0xdc] sm:$0xf]
        %v2143 = vld [vmem:[%s663 + $0xe0] sm:$0xf]
        %v2144 = vld [vmem:[%s663 + $0xe4] sm:$0xf]
        %v2145 = vld [vmem:[%s663 + $0xe8] sm:$0xf]
        %v2146 = vld [vmem:[%s663 + $0xec] sm:$0xf]
        %v2147 = vld [vmem:[%s663 + $0xf0] sm:$0xf]
        %v2148 = vld [vmem:[%s663 + $0xf4] sm:$0xf]
        %v2149 = vld [vmem:[%s663 + $0xf8] sm:$0xf]
        %v2150 = vld [vmem:[%s663 + $0xfc] sm:$0xf]
        %v2151 = vld [vmem:[%s769] sm:$0x1]
        %v2153 = vlaneseq
        %v2154 = vshrl.u32 %v2153, 7
        %v2155 = vsub.s32 0, %v2154
        %v2156 = vrot.slane %v2151, %v2155
        %v2222 = vunpack.c.l.b16 %v2087
        %v2223 = vunpack.c.l.b16 %v2088
        %v2224 = vunpack.c.l.b16 %v2089
        %v2225 = vunpack.c.l.b16 %v2090
        %v2226 = vunpack.c.l.b16 %v2091
        %v2227 = vunpack.c.l.b16 %v2092
        %v2228 = vunpack.c.l.b16 %v2093
        %v2229 = vunpack.c.l.b16 %v2094
        %v2230 = vunpack.c.l.b16 %v2095
        %v2231 = vunpack.c.l.b16 %v2096
        %v2232 = vunpack.c.l.b16 %v2097
        %v2233 = vunpack.c.l.b16 %v2098
        %v2234 = vunpack.c.l.b16 %v2099
        %v2235 = vunpack.c.l.b16 %v2100
        %v2236 = vunpack.c.l.b16 %v2101
        %v2237 = vunpack.c.l.b16 %v2102
        %v2238 = vunpack.c.l.b16 %v2103
        %v2239 = vunpack.c.l.b16 %v2104
        %v2240 = vunpack.c.l.b16 %v2105
        %v2241 = vunpack.c.l.b16 %v2106
        %v2242 = vunpack.c.l.b16 %v2107
        %v2243 = vunpack.c.l.b16 %v2108
        %v2244 = vunpack.c.l.b16 %v2109
        %v2245 = vunpack.c.l.b16 %v2110
        %v2246 = vunpack.c.l.b16 %v2111
        %v2247 = vunpack.c.l.b16 %v2112
        %v2248 = vunpack.c.l.b16 %v2113
        %v2249 = vunpack.c.l.b16 %v2114
        %v2250 = vunpack.c.l.b16 %v2115
        %v2251 = vunpack.c.l.b16 %v2116
        %v2252 = vunpack.c.l.b16 %v2117
        %v2253 = vunpack.c.l.b16 %v2118
        %v2254 = vunpack.c.l.b16 %v2119
        %v2255 = vunpack.c.l.b16 %v2120
        %v2256 = vunpack.c.l.b16 %v2121
        %v2257 = vunpack.c.l.b16 %v2122
        %v2258 = vunpack.c.l.b16 %v2123
        %v2259 = vunpack.c.l.b16 %v2124
        %v2260 = vunpack.c.l.b16 %v2125
        %v2261 = vunpack.c.l.b16 %v2126
        %v2262 = vunpack.c.l.b16 %v2127
        %v2263 = vunpack.c.l.b16 %v2128
        %v2264 = vunpack.c.l.b16 %v2129
        %v2265 = vunpack.c.l.b16 %v2130
        %v2266 = vunpack.c.l.b16 %v2131
        %v2267 = vunpack.c.l.b16 %v2132
        %v2268 = vunpack.c.l.b16 %v2133
        %v2269 = vunpack.c.l.b16 %v2134
        %v2270 = vunpack.c.l.b16 %v2135
        %v2271 = vunpack.c.l.b16 %v2136
        %v2272 = vunpack.c.l.b16 %v2137
        %v2273 = vunpack.c.l.b16 %v2138
        %v2274 = vunpack.c.l.b16 %v2139
        %v2275 = vunpack.c.l.b16 %v2140
        %v2276 = vunpack.c.l.b16 %v2141
        %v2277 = vunpack.c.l.b16 %v2142
        %v2278 = vunpack.c.l.b16 %v2143
        %v2279 = vunpack.c.l.b16 %v2144
        %v2280 = vunpack.c.l.b16 %v2145
        %v2281 = vunpack.c.l.b16 %v2146
        %v2282 = vunpack.c.l.b16 %v2147
        %v2283 = vunpack.c.l.b16 %v2148
        %v2284 = vunpack.c.l.b16 %v2149
        %v2285 = vunpack.c.l.b16 %v2150
        %v2286 = vpack.c.b16 %v2223, %v2222
        %v2287 = vpack.c.b16 %v2225, %v2224
        %v2288 = vpack.c.b16 %v2227, %v2226
        %v2289 = vpack.c.b16 %v2229, %v2228
        %v2290 = vpack.c.b16 %v2231, %v2230
        %v2291 = vpack.c.b16 %v2233, %v2232
        %v2292 = vpack.c.b16 %v2235, %v2234
        %v2293 = vpack.c.b16 %v2237, %v2236
        %v2294 = vpack.c.b16 %v2239, %v2238
        %v2295 = vpack.c.b16 %v2241, %v2240
        %v2296 = vpack.c.b16 %v2243, %v2242
        %v2297 = vpack.c.b16 %v2245, %v2244
        %v2298 = vpack.c.b16 %v2247, %v2246
        %v2299 = vpack.c.b16 %v2249, %v2248
        %v2300 = vpack.c.b16 %v2251, %v2250
        %v2301 = vpack.c.b16 %v2253, %v2252
        %v2302 = vpack.c.b16 %v2255, %v2254
        %v2303 = vpack.c.b16 %v2257, %v2256
        %v2304 = vpack.c.b16 %v2259, %v2258
        %v2305 = vpack.c.b16 %v2261, %v2260
        %v2306 = vpack.c.b16 %v2263, %v2262
        %v2307 = vpack.c.b16 %v2265, %v2264
        %v2308 = vpack.c.b16 %v2267, %v2266
        %v2309 = vpack.c.b16 %v2269, %v2268
        %v2310 = vpack.c.b16 %v2271, %v2270
        %v2311 = vpack.c.b16 %v2273, %v2272
        %v2312 = vpack.c.b16 %v2275, %v2274
        %v2313 = vpack.c.b16 %v2277, %v2276
        %v2314 = vpack.c.b16 %v2279, %v2278
        %v2315 = vpack.c.b16 %v2281, %v2280
        %v2316 = vpack.c.b16 %v2283, %v2282
        %v2317 = vpack.c.b16 %v2285, %v2284
        %2350 = vmatprep.subr.bf16.mxu0 0
        %2351 = vmatpush1.bf16.msra.mxu0 %v2293
        %2352 = vmatprep.subr.bf16.mxu0 0
        %2353 = vmatpush1.bf16.msra.mxu0 %v2292
        %2354 = vmatprep.subr.bf16.mxu0 0
        %2355 = vmatpush1.bf16.msra.mxu0 %v2291
        %2356 = vmatprep.subr.bf16.mxu0 0
        %2357 = vmatpush1.bf16.msra.mxu0 %v2290
        %2358 = vmatprep.subr.bf16.mxu0 0
        %2359 = vmatpush1.bf16.msra.mxu0 %v2289
        %2360 = vmatprep.subr.bf16.mxu0 0
        %2361 = vmatpush1.bf16.msra.mxu0 %v2288
        %2362 = vmatprep.subr.bf16.mxu0 0
        %2363 = vmatpush1.bf16.msra.mxu0 %v2287
        %2364 = vmatprep.subr.bf16.mxu0 0
        %2365 = vmatpush1.bf16.msra.mxu0 %v2286
        %2366 = vmatprep.subr.bf16.mxu0 0
        %2367 = vmatpush2.bf16.msra.mxu0 %v2301
        %2368 = vmatprep.subr.bf16.mxu0 0
        %2369 = vmatpush2.bf16.msra.mxu0 %v2300
        %2370 = vmatprep.subr.bf16.mxu0 0
        %2371 = vmatpush2.bf16.msra.mxu0 %v2299
        %2372 = vmatprep.subr.bf16.mxu0 0
        %2373 = vmatpush2.bf16.msra.mxu0 %v2298
        %2374 = vmatprep.subr.bf16.mxu0 0
        %2375 = vmatpush2.bf16.msra.mxu0 %v2297
        %2376 = vmatprep.subr.bf16.mxu0 0
        %2377 = vmatpush2.bf16.msra.mxu0 %v2296
        %2378 = vmatprep.subr.bf16.mxu0 0
        %2379 = vmatpush2.bf16.msra.mxu0 %v2295
        %2380 = vmatprep.subr.bf16.mxu0 0
        %2381 = vmatpush2.bf16.msra.mxu0 %v2294
        %2382 = vmatprep.mubr.bf16.mxu0 %v2084
        %2383 = vmatmul.mubr.bf16.gmra.mxu0 %v2083
        %v2384 = vpop.f32.mrf.mxu0
        %v2385 = vadd.f32 %v2156, %v2384
        %v2386 = vpop.f32.mrf.mxu0
        %v2387 = vpop.f32.mrf.mxu0
        %v2388 = vpop.f32.mrf.mxu0
        %2389 = vdwg.mxu0
        %2390 = vmatprep.subr.bf16.mxu0 0
        %2391 = vmatpush1.bf16.msra.mxu0 %v2309
        %2392 = vmatprep.subr.bf16.mxu0 0
        %2393 = vmatpush1.bf16.msra.mxu0 %v2308
        %2394 = vmatprep.subr.bf16.mxu0 0
        %2395 = vmatpush1.bf16.msra.mxu0 %v2307
        %2396 = vmatprep.subr.bf16.mxu0 0
        %2397 = vmatpush1.bf16.msra.mxu0 %v2306
        %2398 = vmatprep.subr.bf16.mxu0 0
        %2399 = vmatpush1.bf16.msra.mxu0 %v2305
        %2400 = vmatprep.subr.bf16.mxu0 0
        %2401 = vmatpush1.bf16.msra.mxu0 %v2304
        %2402 = vmatprep.subr.bf16.mxu0 0
        %2403 = vmatpush1.bf16.msra.mxu0 %v2303
        %2404 = vmatprep.subr.bf16.mxu0 0
        %2405 = vmatpush1.bf16.msra.mxu0 %v2302
        %2406 = vmatprep.subr.bf16.mxu0 0
        %2407 = vmatpush2.bf16.msra.mxu0 %v2317
        %2408 = vmatprep.subr.bf16.mxu0 0
        %2409 = vmatpush2.bf16.msra.mxu0 %v2316
        %2410 = vmatprep.subr.bf16.mxu0 0
        %2411 = vmatpush2.bf16.msra.mxu0 %v2315
        %2412 = vmatprep.subr.bf16.mxu0 0
        %2413 = vmatpush2.bf16.msra.mxu0 %v2314
        %2414 = vmatprep.subr.bf16.mxu0 0
        %2415 = vmatpush2.bf16.msra.mxu0 %v2313
        %2416 = vmatprep.subr.bf16.mxu0 0
        %2417 = vmatpush2.bf16.msra.mxu0 %v2312
        %2418 = vmatprep.subr.bf16.mxu0 0
        %2419 = vmatpush2.bf16.msra.mxu0 %v2311
        %2420 = vmatprep.subr.bf16.mxu0 0
        %2421 = vmatpush2.bf16.msra.mxu0 %v2310
        %2422 = vmatprep.mubr.bf16.mxu0 %v2086
        %2423 = vmatmul.mubr.bf16.gmra.mxu0 %v2085
        %v2424 = vpop.f32.mrf.mxu0
        %v2425 = vadd.f32 %v2385, %v2424
        %v2426 = vpop.f32.mrf.mxu0
        %v2427 = vpop.f32.mrf.mxu0
        %v2428 = vpop.f32.mrf.mxu0
        %2429 = vdwg.mxu0
        %v2430 = vadd.f32 %v1754, %v2425
        %2431 = vst [vmem:[#allocation2] sm:$0xff] %v2430
        %p2432 = scmp.eq.s32.totalorder %s45, 1
        // Predicated region
        $region105: #{tpu_custom_call.1} parent=75 // pred_check
          %p2433 = pneg %p2432
        $region106: #{tpu_custom_call.1} parent=75 // pred_check_branch
          %2435 = sbr.rel (%p2433) target = $region108
        $region107: #{tpu_custom_call.1} parent=75 // pred_region
          %v2436 = vld [vmem:[%s12] sm:$0x1]
          %v2437 = vld [vmem:[%s13] sm:$0x1]
          %2438 = vadd.xlane.f32.xlu0 %v2430
          %v2439 = vpop.xlane.xlu0 %2438
          %v2440 = vmul.f32 %v2439, %v787
          %v2441 = vsub.f32 %v2430, %v2440
          %v2442 = vmul.f32 %v2441, %v2441
          %2443 = vadd.xlane.f32.xlu0 %v2442
          %v2444 = vpop.xlane.xlu0 %2443
          %v2445 = vmul.f32 %v2444, %v787
          %v2446 = vadd.f32 %v2445, 1e-05
          %v2447 = vrsqrt.pop %v2446
          %v2448 = vmul.f32 %v2441, %v2447
          %v2450 = vlaneseq
          %v2451 = vshrl.u32 %v2450, 7
          %v2452 = vsub.s32 0, %v2451
          %v2453 = vrot.slane %v2436, %v2452
          %v2455 = vmul.f32 %v2448, %v2453
          %v2457 = vlaneseq
          %v2458 = vshrl.u32 %v2457, 7
          %v2459 = vsub.s32 0, %v2458
          %v2460 = vrot.slane %v2437, %v2459
          %v2462 = vadd.f32 %v2455, %v2460
          %v2463 = vpack.c.bf16 %v2462, %v2462
          %2464 = vst [vmem:[%s750] sm:$0xf] %v2463
        $region108: #{tpu_custom_call.1} parent=75 // pred_fallthru
          _
        %s2465 = sand.u32 %s414, 1
        %s2466 = scalar_lea.sflag [#allocation5], %s2465
        %s2467 = sand.u32 %s414, 1
        %s2468 = smul.addr %s2467, 4
        %s2469 = scalar_lea.vmem [#allocation14], %s2468
        // Predicated region
        $region109: #{tpu_custom_call.1} parent=75 // pred_check
          %p2470 = pneg %p424
        $region110: #{tpu_custom_call.1} parent=75 // pred_check_branch
          %2472 = sbr.rel (%p2470) target = $region112
        $region111: #{tpu_custom_call.1} parent=75 // pred_region
          %s2474 = ssub.s32 64, 64
          %2475 = vsyncadd %s2466, %s2474
          %s2476 = smul.addr %s44, 64
          %s2477 = scalar_lea.hbm %s14, %s2476
          %s2479 = sshll.u32 %s2469, 4
          %s2480 = int_to_ptr.vmem [resolvable:$true] %s2479
          %2482 = dma.vmem_to_hbm [thread:$0]  %s2480, 64, %s2477, %s2466
        $region112: #{tpu_custom_call.1} parent=75 // pred_fallthru
          _
      $region76: #{tpu_custom_call.1} parent=5 // pred_fallthru
        _
      %p2483 = scmp.le.s32.totalorder 2, %s35
      // Predicated region
      $region113: #{tpu_custom_call.1} parent=5 // pred_check
        %p2484 = pneg %p2483
      $region114: #{tpu_custom_call.1} parent=5 // pred_check_branch
        %2486 = sbr.rel (%p2484) target = $region116
      $region115: #{tpu_custom_call.1} parent=5 // pred_region
        %s2487 = ssub.s32 %s35, 2
        // Predicated region
        $region117: #{tpu_custom_call.1} parent=115 // pred_check
          %p2488 = pneg %p430
        $region118: #{tpu_custom_call.1} parent=115 // pred_check_branch
          %2490 = sbr.rel (%p2488) target = $region120
        $region119: #{tpu_custom_call.1} parent=115 // pred_region
          %s2491 = sand.u32 %s415, 1
          %s2492 = scalar_lea.sflag [#allocation5], %s2491
          %s2493 = sand.u32 %s415, 1
          %s2494 = smul.addr %s2493, 4
          %s2495 = scalar_lea.vmem [#allocation14], %s2494
          %2496 = dma.done %s2492, 64
        $region120: #{tpu_custom_call.1} parent=115 // pred_fallthru
          _
      $region116: #{tpu_custom_call.1} parent=5 // pred_fallthru
        _
    $region6: #{tpu_custom_call.1} parent=1 // loop_footer
      %s39 = sadd.s32 1, %s35
    $region7: #{tpu_custom_call.1} parent=1 // loop_footer_branch
      %34 = sbr.rel target = $region3
    $region8: #{tpu_custom_call.1} parent=1 // loop_exit
      _
    %2497 = vsyncpa [#allocation4], 1
    %s2498 = scalar_lea.sflag [#allocation4], 1
    %2499 = vsyncpa %s2498, 1
    %2500 = vsyncpa [#allocation7], 1
    %s2501 = scalar_lea.sflag [#allocation7], 1
    %2502 = vsyncpa %s2501, 1
    %2503 = vsyncpa [#allocation10], 1
    %s2504 = scalar_lea.sflag [#allocation10], 1
    %2505 = vsyncpa %s2504, 1
    %2506 = vsyncpa [#allocation13], 1
    %s2507 = scalar_lea.sflag [#allocation13], 1
    %2508 = vsyncpa %s2507, 1
    %2509 = vsyncpa [#allocation5], 1
    %s2510 = scalar_lea.sflag [#allocation5], 1
    %2511 = vsyncpa %s2510, 1

</llo_original>
